<compile_context>
chip_gen: v6e
topology: v6e:2x2x1
jax: 0.10.0
libtpu: 0.0.40
codegen_flags: <defaults>
</compile_context>

<pallas_src>
import jax
import jax.numpy as jnp
from jax.experimental import pallas as pl
from jax.experimental.pallas import tpu as pltpu


OUT_LANES = 128   # lane-dense output tile width
EDGE_TILE = 128   # edges per grid step (MXU-friendly row count)


def cherry_kernel(idx_ref,                                   # scalar-prefetch SMEM: [src | dst], int32, len 2*E_pad
                  a_ref, x_ref, w_ref, b_ref,                # encoder: A_norm, X, W (bf16), bias (f32)
                  w1_ref, b1_ref, w2_ref, b2_ref,            # decoder MLP (bf16 weights, f32 biases)
                  w3_ref, b3_ref,                            # last layer padded to 128 lanes
                  o_ref,                                      # (TE, 128) f32 output tile
                  h_scratch, diff_scratch):                   # VMEM scratch (f32)
    t = pl.program_id(0)
    te = diff_scratch.shape[0]
    half = idx_ref.shape[0] // 2                              # = E_pad

    # ---- encoder (runs once; h persists in VMEM scratch across edge tiles) ----
    @pl.when(t == 0)
    def _encode():
        support = jnp.dot(x_ref[...], w_ref[...],
                          preferred_element_type=jnp.float32)            # (N_pad, C) f32
        h = jnp.dot(a_ref[...], support.astype(jnp.bfloat16),
                    preferred_element_type=jnp.float32)                  # (N_pad, C) f32
        h_scratch[...] = h + b_ref[...]

    # ---- edge gather + difference on the VPU (no selector matmul) ----
    ebase = t * te

    def gather_body(j, carry):
        src = idx_ref[ebase + j]
        dst = idx_ref[half + ebase + j]
        diff_scratch[pl.ds(j, 1), :] = (
            h_scratch[pl.ds(dst, 1), :] - h_scratch[pl.ds(src, 1), :])
        return carry

    jax.lax.fori_loop(0, te, gather_body, 0)

    # ---- decoder MLP (bf16 MXU operands, f32 accumulation / elementwise) ----
    z = jnp.dot(diff_scratch[...].astype(jnp.bfloat16), w1_ref[...],
                preferred_element_type=jnp.float32) + b1_ref[...]
    z = jnp.maximum(z, 0.0)
    z = jnp.dot(z.astype(jnp.bfloat16), w2_ref[...],
                preferred_element_type=jnp.float32) + b2_ref[...]
    z = jnp.maximum(z, 0.0)
    # last Linear(32 -> 1) with the output column zero-padded to 128 lanes so the
    # store is lane-dense (unmasked vst); wrapper extracts column 0.
    o_ref[...] = jnp.dot(z.astype(jnp.bfloat16), w3_ref[...],
                         preferred_element_type=jnp.float32) + b3_ref[...]


def build_gcn_norm_adj(edge_index, num_nodes):
    """Dense D^{-1/2} (A + I) D^{-1/2}, matching PyG GCNConv defaults."""
    src, dst = edge_index[0], edge_index[1]
    a_hat = jnp.zeros((num_nodes, num_nodes), jnp.float32).at[dst, src].add(1.0)
    a_hat = a_hat + jnp.eye(num_nodes, dtype=jnp.float32)
    deg = a_hat.sum(axis=1)
    dinv = jnp.where(deg > 0.0, 1.0 / jnp.sqrt(deg), 0.0)
    return dinv[:, None] * a_hat * dinv[None, :]


def _round_up(v, m):
    return (v + m - 1) // m * m


def prepare_inputs(x, edge_index, edge_label_index, params):
    """One-time (cacheable) preprocessing: A_norm, padding, bf16 casts, w3 lane-padding."""
    n, c = x.shape
    n_pad = _round_up(max(n, 128), 128)
    e = edge_label_index.shape[1]
    e_pad = _round_up(max(e, EDGE_TILE), EDGE_TILE)

    a_norm = build_gcn_norm_adj(edge_index, n)
    a_pad = jnp.zeros((n_pad, n_pad), jnp.float32).at[:n, :n].set(a_norm)
    x_pad = jnp.zeros((n_pad, c), jnp.float32).at[:n, :].set(x)

    idx = jnp.zeros((2, e_pad), jnp.int32).at[:, :e].set(
        edge_label_index.astype(jnp.int32))
    idx_flat = jnp.concatenate([idx[0], idx[1]])     # [src | dst], shape (2*e_pad,)

    h2 = params["w3"].shape[0]
    w3p = jnp.zeros((h2, OUT_LANES), jnp.float32).at[:, 0].set(params["w3"][:, 0])
    b3p = jnp.zeros((1, OUT_LANES), jnp.float32).at[0, 0].set(params["b3"][0, 0])

    weights = dict(
        w=params["w"].astype(jnp.bfloat16),   b=params["b"],
        w1=params["w1"].astype(jnp.bfloat16), b1=params["b1"],
        w2=params["w2"].astype(jnp.bfloat16), b2=params["b2"],
        w3p=w3p.astype(jnp.bfloat16),         b3p=b3p,
    )
    return (a_pad.astype(jnp.bfloat16), x_pad.astype(jnp.bfloat16),
            idx_flat, weights, e)


def cherry_forward(a_pad, x_pad, idx_flat, weights, num_label_edges):
    n_pad, c = x_pad.shape
    e_pad = idx_flat.shape[0] // 2
    h1 = weights["w1"].shape[1]
    h2 = weights["w2"].shape[1]
    te = EDGE_TILE

    const = lambda t, idx: (0, 0)   # resident blocks (same block index every step)
    grid_spec = pltpu.PrefetchScalarGridSpec(
        num_scalar_prefetch=1,
        grid=(e_pad // te,),
        in_specs=[
            pl.BlockSpec((n_pad, n_pad), const),      # A_norm (bf16)
            pl.BlockSpec((n_pad, c), const),          # X (bf16)
            pl.BlockSpec((c, c), const),              # W (bf16)
            pl.BlockSpec((1, c), const),              # b (f32)
            pl.BlockSpec((c, h1), const),             # W1
            pl.BlockSpec((1, h1), const),             # b1
            pl.BlockSpec((h1, h2), const),            # W2
            pl.BlockSpec((1, h2), const),             # b2
            pl.BlockSpec((h2, OUT_LANES), const),     # W3 (lane-padded)
            pl.BlockSpec((1, OUT_LANES), const),      # b3 (lane-padded)
        ],
        out_specs=pl.BlockSpec((te, OUT_LANES), lambda t, idx: (t, 0)),
        scratch_shapes=[
            pltpu.VMEM((n_pad, c), jnp.float32),      # h (encoder output)
            pltpu.VMEM((te, c), jnp.float32),         # per-tile edge differences
        ],
    )

    flops = 2 * (n_pad * c * c + n_pad * n_pad * c
                 + e_pad * (c * h1 + h1 * h2 + h2 * OUT_LANES))
    bytes_accessed = (a_pad.size * 2 + x_pad.size * 2 + idx_flat.size * 4
                      + weights["w"].size * 2 + weights["b"].size * 4
                      + weights["w1"].size * 2 + weights["b1"].size * 4
                      + weights["w2"].size * 2 + weights["b2"].size * 4
                      + weights["w3p"].size * 2 + weights["b3p"].size * 4
                      + e_pad * OUT_LANES * 4)

    out = pl.pallas_call(
        cherry_kernel,
        out_shape=jax.ShapeDtypeStruct((e_pad, OUT_LANES), jnp.float32),
        grid_spec=grid_spec,
        compiler_params=pltpu.CompilerParams(
            # sequential: h_scratch is filled on step 0 and reused by later edge tiles
            dimension_semantics=("arbitrary",),
            vmem_limit_bytes=32 * 1024 * 1024,        # explicit; safe on v7x's 64 MiB
        ),
        cost_estimate=pl.CostEstimate(
            flops=int(flops), transcendentals=0,
            bytes_accessed=int(bytes_accessed)),
    )(idx_flat, a_pad, x_pad,
      weights["w"], weights["b"],
      weights["w1"], weights["b1"],
      weights["w2"], weights["b2"],
      weights["w3p"], weights["b3p"])

    return out[:num_label_edges, 0]


def reference_forward(params, x, edge_index, edge_label_index):
    """Pure-JAX f32 reference mirroring the PyTorch module semantics."""
    a_norm = build_gcn_norm_adj(edge_index, x.shape[0])
    h = a_norm @ (x @ params["w"]) + params["b"]
    diff = h[edge_label_index[1]] - h[edge_label_index[0]]
    z = jnp.maximum(diff @ params["w1"] + params["b1"], 0.0)
    z = jnp.maximum(z @ params["w2"] + params["b2"], 0.0)
    return (z @ params["w3"] + params["b3"]).reshape(-1)


def init_params(key, in_channels, out_channels, hidden_dim_1, hidden_dim_2):
    ks = jax.random.split(key, 4)

    def lin(k, fan_in, fan_out):
        scale = 1.0 / jnp.sqrt(fan_in)
        kw, kb = jax.random.split(k)
        w = jax.random.uniform(kw, (fan_in, fan_out), jnp.float32, -scale, scale)
        b = jax.random.uniform(kb, (1, fan_out), jnp.float32, -scale, scale)
        return w, b

    w, b = lin(ks[0], in_channels, out_channels)       # GCNConv weight + bias
    w1, b1 = lin(ks[1], out_channels, hidden_dim_1)
    w2, b2 = lin(ks[2], hidden_dim_1, hidden_dim_2)
    w3, b3 = lin(ks[3], hidden_dim_2, 1)
    return dict(w=w, b=b, w1=w1, b1=b1, w2=w2, b2=b2, w3=w3, b3=b3)


if __name__ == "__main__":
    # Module defaults: in_channels = out_channels = 4**4 = 256, hidden dims 128 / 32.
    IN_C, OUT_C, H1, H2 = 256, 256, 128, 32
    N_NODES, N_EDGES, N_LABEL = 64, 256, 96

    key = jax.random.PRNGKey(0)
    k_x, k_e, k_l, k_p = jax.random.split(key, 4)

    x = jax.random.normal(k_x, (N_NODES, IN_C), jnp.float32)
    edge_index = jax.random.randint(k_e, (2, N_EDGES), 0, N_NODES, jnp.int32)
    edge_label_index = jax.random.randint(k_l, (2, N_LABEL), 0, N_NODES, jnp.int32)
    params = init_params(k_p, IN_C, OUT_C, H1, H2)

    # One-time preprocessing (cache this when edge_index is static across calls).
    a_pad, x_pad, idx_flat, weights, n_label = prepare_inputs(
        x, edge_index, edge_label_index, params)

    prob = cherry_forward(a_pad, x_pad, idx_flat, weights, n_label)
    prob = jax.block_until_ready(prob)

    ref = reference_forward(params, x, edge_index, edge_label_index)
    assert prob.shape == (N_LABEL,)
    # bf16 MXU operands (f32 accumulation) vs pure-f32 reference -> loose tolerance.
    assert jnp.allclose(prob, ref, rtol=5e-2, atol=5e-2), (prob, ref)

    print("KERNEL_OK")
</pallas_src>

<mosaic_0001>
module attributes {stable_mosaic.version = 11 : i64} {
  func.func @cherry_kernel(%arg0: i32, %arg1: memref<256xi32, #tpu.memory_space<smem>>, %arg2: memref<128x128xbf16, #tpu.memory_space<vmem>>, %arg3: memref<128x256xbf16, #tpu.memory_space<vmem>>, %arg4: memref<256x256xbf16, #tpu.memory_space<vmem>>, %arg5: memref<1x256xf32, #tpu.memory_space<vmem>>, %arg6: memref<256x128xbf16, #tpu.memory_space<vmem>>, %arg7: memref<1x128xf32, #tpu.memory_space<vmem>>, %arg8: memref<128x32xbf16, #tpu.memory_space<vmem>>, %arg9: memref<1x32xf32, #tpu.memory_space<vmem>>, %arg10: memref<32x128xbf16, #tpu.memory_space<vmem>>, %arg11: memref<1x128xf32, #tpu.memory_space<vmem>>, %arg12: memref<128x128xf32, #tpu.memory_space<vmem>>, %arg13: memref<128x256xf32, #tpu.memory_space<vmem>>, %arg14: memref<128x256xf32, #tpu.memory_space<vmem>>) attributes {dimension_semantics = [#tpu.dimension_semantics<arbitrary>], iteration_bounds = array<i64: 1>, scalar_prefetch = 1 : i64, scratch_operands = 2 : i64, tpu.core_type = #tpu.core_type<tc>, window_params = [{pipeline_mode = #tpu.pipeline_mode<synchronous>, transform_indices = @transform_0, window_bounds = array<i64: 128, 128>}, {pipeline_mode = #tpu.pipeline_mode<synchronous>, transform_indices = @transform_1, window_bounds = array<i64: 128, 256>}, {pipeline_mode = #tpu.pipeline_mode<synchronous>, transform_indices = @transform_2, window_bounds = array<i64: 256, 256>}, {pipeline_mode = #tpu.pipeline_mode<synchronous>, transform_indices = @transform_3, window_bounds = array<i64: 1, 256>}, {pipeline_mode = #tpu.pipeline_mode<synchronous>, transform_indices = @transform_4, window_bounds = array<i64: 256, 128>}, {pipeline_mode = #tpu.pipeline_mode<synchronous>, transform_indices = @transform_5, window_bounds = array<i64: 1, 128>}, {pipeline_mode = #tpu.pipeline_mode<synchronous>, transform_indices = @transform_6, window_bounds = array<i64: 128, 32>}, {pipeline_mode = #tpu.pipeline_mode<synchronous>, transform_indices = @transform_7, window_bounds = array<i64: 1, 32>}, {pipeline_mode = #tpu.pipeline_mode<synchronous>, transform_indices = @transform_8, window_bounds = array<i64: 32, 128>}, {pipeline_mode = #tpu.pipeline_mode<synchronous>, transform_indices = @transform_9, window_bounds = array<i64: 1, 128>}, {transform_indices = @transform_10, window_bounds = array<i64: 128, 128>}]} {
    %c0_i32 = arith.constant 0 : i32
    %0 = arith.cmpi eq, %arg0, %c0_i32 : i32
    %1 = arith.extui %0 : i1 to i32
    %c0_i32_0 = arith.constant 0 : i32
    %2 = arith.cmpi ne, %1, %c0_i32_0 : i32
    scf.if %2 {
      %c0_23 = arith.constant 0 : index
      %c0_24 = arith.constant 0 : index
      %29 = vector.load %arg3[%c0_23, %c0_24] : memref<128x256xbf16, #tpu.memory_space<vmem>>, vector<128x256xbf16>
      %c0_25 = arith.constant 0 : index
      %c0_26 = arith.constant 0 : index
      %30 = vector.load %arg4[%c0_25, %c0_26] : memref<256x256xbf16, #tpu.memory_space<vmem>>, vector<256x256xbf16>
      %cst_27 = arith.constant dense<0.000000e+00> : vector<128x256xf32>
      %31 = tpu.matmul %29, %30, %cst_27 {dimension_numbers = #tpu.dot_dimension_numbers<[1], [0], [0], [1], [0, 0, 1, 1], [], []>} : vector<128x256xbf16>, vector<256x256xbf16>, vector<128x256xf32> -> vector<128x256xf32>
      %c0_28 = arith.constant 0 : index
      %c0_29 = arith.constant 0 : index
      %32 = vector.load %arg2[%c0_28, %c0_29] : memref<128x128xbf16, #tpu.memory_space<vmem>>, vector<128x128xbf16>
      %33 = arith.truncf %31 : vector<128x256xf32> to vector<128x256xbf16>
      %cst_30 = arith.constant dense<0.000000e+00> : vector<128x256xf32>
      %34 = tpu.matmul %32, %33, %cst_30 {dimension_numbers = #tpu.dot_dimension_numbers<[1], [0], [0], [1], [0, 0, 1, 1], [], []>} : vector<128x128xbf16>, vector<128x256xbf16>, vector<128x256xf32> -> vector<128x256xf32>
      %c0_31 = arith.constant 0 : index
      %c0_32 = arith.constant 0 : index
      %35 = vector.load %arg5[%c0_31, %c0_32] : memref<1x256xf32, #tpu.memory_space<vmem>>, vector<1x256xf32>
      %36 = vector.broadcast %35 : vector<1x256xf32> to vector<128x256xf32>
      %37 = arith.addf %34, %36 : vector<128x256xf32>
      %c0_33 = arith.constant 0 : index
      %c0_34 = arith.constant 0 : index
      %38 = vector.load %arg13[%c0_33, %c0_34] : memref<128x256xf32, #tpu.memory_space<vmem>>, vector<128x256xf32>
      tpu.vector_store %arg13[%c0_33, %c0_34], %37 {strides = array<i32>} : memref<128x256xf32, #tpu.memory_space<vmem>>, vector<128x256xf32>,
    } else {
    }
    %c128_i32 = arith.constant 128 : i32
    %3 = arith.muli %arg0, %c128_i32 : i32
    %c0_i32_1 = arith.constant 0 : i32
    %c128_i32_2 = arith.constant 128 : i32
    %4 = arith.addi %c0_i32_1, %c128_i32_2 : i32
    %c1_i32 = arith.constant 1 : i32
    scf.for %arg15 = %c0_i32_1 to %4 step %c1_i32  : i32 {
      %29 = arith.addi %3, %arg15 : i32
      %30 = arith.index_cast %29 : i32 to index
      %31 = memref.load %arg1[%30] : memref<256xi32, #tpu.memory_space<smem>>
      %c128_i32_23 = arith.constant 128 : i32
      %32 = arith.addi %c128_i32_23, %3 : i32
      %33 = arith.addi %32, %arg15 : i32
      %34 = arith.index_cast %33 : i32 to index
      %35 = memref.load %arg1[%34] : memref<256xi32, #tpu.memory_space<smem>>
      %36 = arith.index_cast %35 : i32 to index
      %c0_24 = arith.constant 0 : index
      %37 = vector.load %arg13[%36, %c0_24] : memref<128x256xf32, #tpu.memory_space<vmem>>, vector<1x256xf32>
      %38 = arith.index_cast %31 : i32 to index
      %c0_25 = arith.constant 0 : index
      %39 = vector.load %arg13[%38, %c0_25] : memref<128x256xf32, #tpu.memory_space<vmem>>, vector<1x256xf32>
      %40 = arith.subf %37, %39 : vector<1x256xf32>
      %41 = arith.index_cast %arg15 : i32 to index
      %c0_26 = arith.constant 0 : index
      %42 = vector.load %arg14[%41, %c0_26] : memref<128x256xf32, #tpu.memory_space<vmem>>, vector<1x256xf32>
      tpu.vector_store %arg14[%41, %c0_26], %40 {strides = array<i32>} : memref<128x256xf32, #tpu.memory_space<vmem>>, vector<1x256xf32>,
    }
    %c128_i32_3 = arith.constant 128 : i32
    %c0 = arith.constant 0 : index
    %c0_4 = arith.constant 0 : index
    %5 = vector.load %arg14[%c0, %c0_4] : memref<128x256xf32, #tpu.memory_space<vmem>>, vector<128x256xf32>
    %6 = arith.truncf %5 : vector<128x256xf32> to vector<128x256xbf16>
    %c0_5 = arith.constant 0 : index
    %c0_6 = arith.constant 0 : index
    %7 = vector.load %arg6[%c0_5, %c0_6] : memref<256x128xbf16, #tpu.memory_space<vmem>>, vector<256x128xbf16>
    %cst = arith.constant dense<0.000000e+00> : vector<128x128xf32>
    %8 = tpu.matmul %6, %7, %cst {dimension_numbers = #tpu.dot_dimension_numbers<[1], [0], [0], [1], [0, 0, 1, 1], [], []>} : vector<128x256xbf16>, vector<256x128xbf16>, vector<128x128xf32> -> vector<128x128xf32>
    %c0_7 = arith.constant 0 : index
    %c0_8 = arith.constant 0 : index
    %9 = vector.load %arg7[%c0_7, %c0_8] : memref<1x128xf32, #tpu.memory_space<vmem>>, vector<1x128xf32>
    %10 = vector.broadcast %9 : vector<1x128xf32> to vector<128x128xf32>
    %11 = arith.addf %8, %10 : vector<128x128xf32>
    %cst_9 = arith.constant 0.000000e+00 : f32
    %12 = vector.broadcast %cst_9 : f32 to vector<128x128xf32>
    %13 = arith.maximumf %11, %12 : vector<128x128xf32>
    %14 = arith.truncf %13 : vector<128x128xf32> to vector<128x128xbf16>
    %c0_10 = arith.constant 0 : index
    %c0_11 = arith.constant 0 : index
    %15 = vector.load %arg8[%c0_10, %c0_11] : memref<128x32xbf16, #tpu.memory_space<vmem>>, vector<128x32xbf16>
    %cst_12 = arith.constant dense<0.000000e+00> : vector<128x32xf32>
    %16 = tpu.matmul %14, %15, %cst_12 {dimension_numbers = #tpu.dot_dimension_numbers<[1], [0], [0], [1], [0, 0, 1, 1], [], []>} : vector<128x128xbf16>, vector<128x32xbf16>, vector<128x32xf32> -> vector<128x32xf32>
    %c0_13 = arith.constant 0 : index
    %c0_14 = arith.constant 0 : index
    %17 = vector.load %arg9[%c0_13, %c0_14] : memref<1x32xf32, #tpu.memory_space<vmem>>, vector<1x32xf32>
    %18 = vector.broadcast %17 : vector<1x32xf32> to vector<128x32xf32>
    %19 = arith.addf %16, %18 : vector<128x32xf32>
    %cst_15 = arith.constant 0.000000e+00 : f32
    %20 = vector.broadcast %cst_15 : f32 to vector<128x32xf32>
    %21 = arith.maximumf %19, %20 : vector<128x32xf32>
    %22 = arith.truncf %21 : vector<128x32xf32> to vector<128x32xbf16>
    %c0_16 = arith.constant 0 : index
    %c0_17 = arith.constant 0 : index
    %23 = vector.load %arg10[%c0_16, %c0_17] : memref<32x128xbf16, #tpu.memory_space<vmem>>, vector<32x128xbf16>
    %cst_18 = arith.constant dense<0.000000e+00> : vector<128x128xf32>
    %24 = tpu.matmul %22, %23, %cst_18 {dimension_numbers = #tpu.dot_dimension_numbers<[1], [0], [0], [1], [0, 0, 1, 1], [], []>} : vector<128x32xbf16>, vector<32x128xbf16>, vector<128x128xf32> -> vector<128x128xf32>
    %c0_19 = arith.constant 0 : index
    %c0_20 = arith.constant 0 : index
    %25 = vector.load %arg11[%c0_19, %c0_20] : memref<1x128xf32, #tpu.memory_space<vmem>>, vector<1x128xf32>
    %26 = vector.broadcast %25 : vector<1x128xf32> to vector<128x128xf32>
    %27 = arith.addf %24, %26 : vector<128x128xf32>
    %c0_21 = arith.constant 0 : index
    %c0_22 = arith.constant 0 : index
    %28 = vector.load %arg12[%c0_21, %c0_22] : memref<128x128xf32, #tpu.memory_space<vmem>>, vector<128x128xf32>
    tpu.vector_store %arg12[%c0_21, %c0_22], %27 {strides = array<i32>} : memref<128x128xf32, #tpu.memory_space<vmem>>, vector<128x128xf32>,
    return
  }
  func.func @transform_0(%arg0: i32, %arg1: memref<256xi32, #tpu.memory_space<smem>>) -> (i32, i32) {
    %c0_i32 = arith.constant 0 : i32
    %c0_i32_0 = arith.constant 0 : i32
    %c0_i32_1 = arith.constant 0 : i32
    return %c0_i32, %c0_i32_0 : i32, i32
  }
  func.func @transform_1(%arg0: i32, %arg1: memref<256xi32, #tpu.memory_space<smem>>) -> (i32, i32) {
    %c0_i32 = arith.constant 0 : i32
    %c0_i32_0 = arith.constant 0 : i32
    %c0_i32_1 = arith.constant 0 : i32
    return %c0_i32, %c0_i32_0 : i32, i32
  }
  func.func @transform_2(%arg0: i32, %arg1: memref<256xi32, #tpu.memory_space<smem>>) -> (i32, i32) {
    %c0_i32 = arith.constant 0 : i32
    %c0_i32_0 = arith.constant 0 : i32
    %c0_i32_1 = arith.constant 0 : i32
    return %c0_i32, %c0_i32_0 : i32, i32
  }
  func.func @transform_3(%arg0: i32, %arg1: memref<256xi32, #tpu.memory_space<smem>>) -> (i32, i32) {
    %c0_i32 = arith.constant 0 : i32
    %c0_i32_0 = arith.constant 0 : i32
    %c0_i32_1 = arith.constant 0 : i32
    return %c0_i32, %c0_i32_0 : i32, i32
  }
  func.func @transform_4(%arg0: i32, %arg1: memref<256xi32, #tpu.memory_space<smem>>) -> (i32, i32) {
    %c0_i32 = arith.constant 0 : i32
    %c0_i32_0 = arith.constant 0 : i32
    %c0_i32_1 = arith.constant 0 : i32
    return %c0_i32, %c0_i32_0 : i32, i32
  }
  func.func @transform_5(%arg0: i32, %arg1: memref<256xi32, #tpu.memory_space<smem>>) -> (i32, i32) {
    %c0_i32 = arith.constant 0 : i32
    %c0_i32_0 = arith.constant 0 : i32
    %c0_i32_1 = arith.constant 0 : i32
    return %c0_i32, %c0_i32_0 : i32, i32
  }
  func.func @transform_6(%arg0: i32, %arg1: memref<256xi32, #tpu.memory_space<smem>>) -> (i32, i32) {
    %c0_i32 = arith.constant 0 : i32
    %c0_i32_0 = arith.constant 0 : i32
    %c0_i32_1 = arith.constant 0 : i32
    return %c0_i32, %c0_i32_0 : i32, i32
  }
  func.func @transform_7(%arg0: i32, %arg1: memref<256xi32, #tpu.memory_space<smem>>) -> (i32, i32) {
    %c0_i32 = arith.constant 0 : i32
    %c0_i32_0 = arith.constant 0 : i32
    %c0_i32_1 = arith.constant 0 : i32
    return %c0_i32, %c0_i32_0 : i32, i32
  }
  func.func @transform_8(%arg0: i32, %arg1: memref<256xi32, #tpu.memory_space<smem>>) -> (i32, i32) {
    %c0_i32 = arith.constant 0 : i32
    %c0_i32_0 = arith.constant 0 : i32
    %c0_i32_1 = arith.constant 0 : i32
    return %c0_i32, %c0_i32_0 : i32, i32
  }
  func.func @transform_9(%arg0: i32, %arg1: memref<256xi32, #tpu.memory_space<smem>>) -> (i32, i32) {
    %c0_i32 = arith.constant 0 : i32
    %c0_i32_0 = arith.constant 0 : i32
    %c0_i32_1 = arith.constant 0 : i32
    return %c0_i32, %c0_i32_0 : i32, i32
  }
  func.func @transform_10(%arg0: i32, %arg1: memref<256xi32, #tpu.memory_space<smem>>) -> (i32, i32) {
    %c0_i32 = arith.constant 0 : i32
    %c0_i32_0 = arith.constant 0 : i32
    return %arg0, %c0_i32 : i32, i32
  }
}

</mosaic_0001>

<llo_original>
// kernel: tpu_custom_call.1
$region0: #{tpu_custom_call.1}
  #allocation0 [shape = 'u32[]', space=smem, size = 0x4, offset = 0x4, fixed_abs, tag = 'smem constant byte address 0x4 - core index']
  #allocation1 [shape = 'u32[144,128]{1,0:T(1,128)}', space=vmem, size = 0x12000, scoped, tag = 'internal scratch']
  #allocation2 [shape = 'f32[128,256]{1,0:T(8,128)}', space=vmem, size = 0x20000, scoped, tag = 'scratch operand']
  #allocation3 [shape = 'f32[128,256]{1,0:T(8,128)}', space=vmem, size = 0x20000, scoped, tag = 'scratch operand']
  #allocation4 [shape = 's32[1]{0}', space=sflag, size = 0x4, scoped, tag = 'scoped memory for tpu_custom_call.1']
  #allocation5 [shape = 'u8[1024]{0}', space=smem, size = 0x400, scoped, tag = 'prefetched SMEM operand 0']
  %s0 = inlined_call_operand.hbm [shape: s32[256], index: 0, kind: input, shape index: {}]
  %s1 = inlined_call_operand.vmem [shape: bf16[128,128], index: 1, kind: input, shape index: {}]
  %s2 = inlined_call_operand.hbm [shape: bf16[128,256], index: 2, kind: input, shape index: {}]
  %s3 = inlined_call_operand.hbm [shape: bf16[256,256], index: 3, kind: input, shape index: {}]
  %s4 = inlined_call_operand.vmem [shape: f32[1,256], index: 4, kind: input, shape index: {}]
  %s5 = inlined_call_operand.hbm [shape: bf16[256,128], index: 5, kind: input, shape index: {}]
  %s6 = inlined_call_operand.vmem [shape: f32[1,128], index: 6, kind: input, shape index: {}]
  %s7 = inlined_call_operand.vmem [shape: bf16[128,32], index: 7, kind: input, shape index: {}]
  %s8 = inlined_call_operand.vmem [shape: f32[1,32], index: 8, kind: input, shape index: {}]
  %s9 = inlined_call_operand.vmem [shape: bf16[32,128], index: 9, kind: input, shape index: {}]
  %s10 = inlined_call_operand.vmem [shape: f32[1,128], index: 10, kind: input, shape index: {}]
  %s11 = inlined_call_operand.hbm [shape: f32[128,128], index: 11, kind: output, shape index: {}]
  %s12 = sld [smem:[#allocation0]]
  $region73: #{tpu_custom_call.1} parent=0
    _
  %s14 = ssub.s32 1, %s12
  %s15 = scalar_select 0, %s14, %s12
  %17 = dma.hbm_to_smem %s0, 32, [#allocation5], [#allocation4]
  %18 = dma.done [#allocation4], 32
  %19 = sfence
  $region1: #{tpu_custom_call.1} parent=0
    #allocation6 [shape = 'u8[65536]{0}', space=vmem, size = 0x10000, scoped, tag = 'input window, operand 2, single buffered']
    #allocation7 [shape = 's32[1]{0}', space=sflag, size = 0x4, scoped, tag = 'scoped memory for tpu_custom_call.1']
    #allocation8 [shape = 's32[1]{0}', space=sflag, size = 0x4, scoped, tag = 'scoped memory for tpu_custom_call.1']
    #allocation9 [shape = 'u8[131072]{0}', space=vmem, size = 0x20000, scoped, tag = 'input window, operand 3, single buffered']
    #allocation10 [shape = 's32[1]{0}', space=sflag, size = 0x4, scoped, tag = 'scoped memory for tpu_custom_call.1']
    #allocation11 [shape = 'u8[65536]{0}', space=vmem, size = 0x10000, scoped, tag = 'input window, operand 5, single buffered']
    #allocation12 [shape = 'u8[65536]{0}', space=vmem, size = 0x10000, scoped, tag = 'output window, operand 0, single buffered']
    %20 = vsyncpa [#allocation7], 0
    %21 = vsyncpa [#allocation10], 0
    %22 = vsyncpa [#allocation8], 0
    // Predicated region
    $region2: #{tpu_custom_call.1} parent=1 // pred_check
      _
    $region3: #{tpu_custom_call.1} parent=1 // pred_check_branch
      %24 = sbr.rel (0) target = $region5
    $region4: #{tpu_custom_call.1} parent=1 // pred_region
      _
    $region5: #{tpu_custom_call.1} parent=1 // pred_fallthru
      _
    // Predicated region
    $region6: #{tpu_custom_call.1} parent=1 // pred_check
      _
    $region7: #{tpu_custom_call.1} parent=1 // pred_check_branch
      %26 = sbr.rel (0) target = $region9
    $region8: #{tpu_custom_call.1} parent=1 // pred_region
      %s28 = ssub.s32 2048, 2048
      %29 = vsyncadd [#allocation7], %s28
      %s30 = sshll.u32 [#allocation6], 4
      %s31 = int_to_ptr.vmem [resolvable:$true] %s30
      %36 = dma.hbm_to_vmem [thread:$0]  %s2, 2048, %s31, [#allocation7], 128, 128, 8
    $region9: #{tpu_custom_call.1} parent=1 // pred_fallthru
      _
    // Predicated region
    $region10: #{tpu_custom_call.1} parent=1 // pred_check
      _
    $region11: #{tpu_custom_call.1} parent=1 // pred_check_branch
      %38 = sbr.rel (0) target = $region13
    $region12: #{tpu_custom_call.1} parent=1 // pred_region
      %s40 = ssub.s32 4096, 4096
      %41 = vsyncadd [#allocation10], %s40
      %s42 = sshll.u32 [#allocation9], 4
      %s43 = int_to_ptr.vmem [resolvable:$true] %s42
      %48 = dma.hbm_to_vmem [thread:$0]  %s3, 4096, %s43, [#allocation10], 128, 128, 8
    $region13: #{tpu_custom_call.1} parent=1 // pred_fallthru
      _
    // Predicated region
    $region14: #{tpu_custom_call.1} parent=1 // pred_check
      _
    $region15: #{tpu_custom_call.1} parent=1 // pred_check_branch
      %50 = sbr.rel (0) target = $region17
    $region16: #{tpu_custom_call.1} parent=1 // pred_region
      _
    $region17: #{tpu_custom_call.1} parent=1 // pred_fallthru
      _
    // Predicated region
    $region18: #{tpu_custom_call.1} parent=1 // pred_check
      _
    $region19: #{tpu_custom_call.1} parent=1 // pred_check_branch
      %52 = sbr.rel (0) target = $region21
    $region20: #{tpu_custom_call.1} parent=1 // pred_region
      %s54 = ssub.s32 2048, 2048
      %55 = vsyncadd [#allocation10], %s54
      %s56 = sshll.u32 [#allocation11], 4
      %s57 = int_to_ptr.vmem [resolvable:$true] %s56
      %62 = dma.hbm_to_vmem [thread:$0]  %s5, 2048, %s57, [#allocation10], 64, 64, 4
    $region21: #{tpu_custom_call.1} parent=1 // pred_fallthru
      _
    // Predicated region
    $region22: #{tpu_custom_call.1} parent=1 // pred_check
      _
    $region23: #{tpu_custom_call.1} parent=1 // pred_check_branch
      %64 = sbr.rel (0) target = $region25
    $region24: #{tpu_custom_call.1} parent=1 // pred_region
      _
    $region25: #{tpu_custom_call.1} parent=1 // pred_fallthru
      _
    // Predicated region
    $region26: #{tpu_custom_call.1} parent=1 // pred_check
      _
    $region27: #{tpu_custom_call.1} parent=1 // pred_check_branch
      %66 = sbr.rel (0) target = $region29
    $region28: #{tpu_custom_call.1} parent=1 // pred_region
      _
    $region29: #{tpu_custom_call.1} parent=1 // pred_fallthru
      _
    // Predicated region
    $region30: #{tpu_custom_call.1} parent=1 // pred_check
      _
    $region31: #{tpu_custom_call.1} parent=1 // pred_check_branch
      %68 = sbr.rel (0) target = $region33
    $region32: #{tpu_custom_call.1} parent=1 // pred_region
      _
    $region33: #{tpu_custom_call.1} parent=1 // pred_fallthru
      _
    // Predicated region
    $region34: #{tpu_custom_call.1} parent=1 // pred_check
      _
    $region35: #{tpu_custom_call.1} parent=1 // pred_check_branch
      %70 = sbr.rel (0) target = $region37
    $region36: #{tpu_custom_call.1} parent=1 // pred_region
      _
    $region37: #{tpu_custom_call.1} parent=1 // pred_fallthru
      _
    // Predicated region
    $region38: #{tpu_custom_call.1} parent=1 // pred_check
      _
    $region39: #{tpu_custom_call.1} parent=1 // pred_check_branch
      %72 = sbr.rel (0) target = $region41
    $region40: #{tpu_custom_call.1} parent=1 // pred_region
      _
    $region41: #{tpu_custom_call.1} parent=1 // pred_fallthru
      _
    // Predicated region
    $region42: #{tpu_custom_call.1} parent=1 // pred_check
      _
    $region43: #{tpu_custom_call.1} parent=1 // pred_check_branch
      %74 = sbr.rel (0) target = $region45
    $region44: #{tpu_custom_call.1} parent=1 // pred_region
      %75 = dma.done [#allocation7], 2048
    $region45: #{tpu_custom_call.1} parent=1 // pred_fallthru
      _
    // Predicated region
    $region46: #{tpu_custom_call.1} parent=1 // pred_check
      _
    $region47: #{tpu_custom_call.1} parent=1 // pred_check_branch
      %77 = sbr.rel (0) target = $region49
    $region48: #{tpu_custom_call.1} parent=1 // pred_region
      %78 = dma.done [#allocation10], 4096
    $region49: #{tpu_custom_call.1} parent=1 // pred_fallthru
      _
    // Predicated region
    $region50: #{tpu_custom_call.1} parent=1 // pred_check
      _
    $region51: #{tpu_custom_call.1} parent=1 // pred_check_branch
      %80 = sbr.rel (0) target = $region53
    $region52: #{tpu_custom_call.1} parent=1 // pred_region
      %81 = dma.done [#allocation10], 2048
    $region53: #{tpu_custom_call.1} parent=1 // pred_fallthru
      _
    %p83 = scmp.eq.s32.totalorder 0, 0
    // Predicated region
    $region54: #{tpu_custom_call.1} parent=1 // pred_check
      %p84 = pneg %p83
    $region55: #{tpu_custom_call.1} parent=1 // pred_check_branch
      %86 = sbr.rel (%p84) target = $region57
    $region56: #{tpu_custom_call.1} parent=1 // pred_region
      %v87 = vld [vmem:[#allocation6] sm:$0xff]
      %v88 = vld [vmem:[#allocation6 + $0x8] sm:$0xff]
      %v89 = vld [vmem:[#allocation6 + $0x10] sm:$0xff]
      %v90 = vld [vmem:[#allocation6 + $0x18] sm:$0xff]
      %v91 = vld [vmem:[#allocation6 + $0x20] sm:$0xff]
      %v92 = vld [vmem:[#allocation6 + $0x28] sm:$0xff]
      %v93 = vld [vmem:[#allocation6 + $0x30] sm:$0xff]
      %v94 = vld [vmem:[#allocation6 + $0x38] sm:$0xff]
      %v95 = vld [vmem:[#allocation6 + $0x40] sm:$0xff]
      %v96 = vld [vmem:[#allocation6 + $0x48] sm:$0xff]
      %v97 = vld [vmem:[#allocation6 + $0x50] sm:$0xff]
      %v98 = vld [vmem:[#allocation6 + $0x58] sm:$0xff]
      %v99 = vld [vmem:[#allocation6 + $0x60] sm:$0xff]
      %v100 = vld [vmem:[#allocation6 + $0x68] sm:$0xff]
      %v101 = vld [vmem:[#allocation6 + $0x70] sm:$0xff]
      %v102 = vld [vmem:[#allocation6 + $0x78] sm:$0xff]
      %v103 = vld [vmem:[#allocation9] sm:$0xff]
      %v104 = vld [vmem:[#allocation9 + $0x8] sm:$0xff]
      %v105 = vld [vmem:[#allocation9 + $0x10] sm:$0xff]
      %v106 = vld [vmem:[#allocation9 + $0x18] sm:$0xff]
      %v107 = vld [vmem:[#allocation9 + $0x20] sm:$0xff]
      %v108 = vld [vmem:[#allocation9 + $0x28] sm:$0xff]
      %v109 = vld [vmem:[#allocation9 + $0x30] sm:$0xff]
      %v110 = vld [vmem:[#allocation9 + $0x38] sm:$0xff]
      %v111 = vld [vmem:[#allocation9 + $0x40] sm:$0xff]
      %v112 = vld [vmem:[#allocation9 + $0x48] sm:$0xff]
      %v113 = vld [vmem:[#allocation9 + $0x50] sm:$0xff]
      %v114 = vld [vmem:[#allocation9 + $0x58] sm:$0xff]
      %v115 = vld [vmem:[#allocation9 + $0x60] sm:$0xff]
      %v116 = vld [vmem:[#allocation9 + $0x68] sm:$0xff]
      %v117 = vld [vmem:[#allocation9 + $0x70] sm:$0xff]
      %v118 = vld [vmem:[#allocation9 + $0x78] sm:$0xff]
      %v119 = vld [vmem:[#allocation9 + $0x80] sm:$0xff]
      %v120 = vld [vmem:[#allocation9 + $0x88] sm:$0xff]
      %v121 = vld [vmem:[#allocation9 + $0x90] sm:$0xff]
      %v122 = vld [vmem:[#allocation9 + $0x98] sm:$0xff]
      %v123 = vld [vmem:[#allocation9 + $0xa0] sm:$0xff]
      %v124 = vld [vmem:[#allocation9 + $0xa8] sm:$0xff]
      %v125 = vld [vmem:[#allocation9 + $0xb0] sm:$0xff]
      %v126 = vld [vmem:[#allocation9 + $0xb8] sm:$0xff]
      %v127 = vld [vmem:[#allocation9 + $0xc0] sm:$0xff]
      %v128 = vld [vmem:[#allocation9 + $0xc8] sm:$0xff]
      %v129 = vld [vmem:[#allocation9 + $0xd0] sm:$0xff]
      %v130 = vld [vmem:[#allocation9 + $0xd8] sm:$0xff]
      %v131 = vld [vmem:[#allocation9 + $0xe0] sm:$0xff]
      %v132 = vld [vmem:[#allocation9 + $0xe8] sm:$0xff]
      %v133 = vld [vmem:[#allocation9 + $0xf0] sm:$0xff]
      %v134 = vld [vmem:[#allocation9 + $0xf8] sm:$0xff]
      %v151 = vunpack.c.l.b16 %v87
      %v152 = vunpack.c.h.b16 %v87
      %v153 = vunpack.c.l.b16 %v88
      %v154 = vunpack.c.h.b16 %v88
      %v155 = vunpack.c.l.b16 %v89
      %v156 = vunpack.c.h.b16 %v89
      %v157 = vunpack.c.l.b16 %v90
      %v158 = vunpack.c.h.b16 %v90
      %v159 = vunpack.c.l.b16 %v91
      %v160 = vunpack.c.h.b16 %v91
      %v161 = vunpack.c.l.b16 %v92
      %v162 = vunpack.c.h.b16 %v92
      %v163 = vunpack.c.l.b16 %v93
      %v164 = vunpack.c.h.b16 %v93
      %v165 = vunpack.c.l.b16 %v94
      %v166 = vunpack.c.h.b16 %v94
      %v167 = vunpack.c.l.b16 %v95
      %v168 = vunpack.c.h.b16 %v95
      %v169 = vunpack.c.l.b16 %v96
      %v170 = vunpack.c.h.b16 %v96
      %v171 = vunpack.c.l.b16 %v97
      %v172 = vunpack.c.h.b16 %v97
      %v173 = vunpack.c.l.b16 %v98
      %v174 = vunpack.c.h.b16 %v98
      %v175 = vunpack.c.l.b16 %v99
      %v176 = vunpack.c.h.b16 %v99
      %v177 = vunpack.c.l.b16 %v100
      %v178 = vunpack.c.h.b16 %v100
      %v179 = vunpack.c.l.b16 %v101
      %v180 = vunpack.c.h.b16 %v101
      %v181 = vunpack.c.l.b16 %v102
      %v182 = vunpack.c.h.b16 %v102
      %v183 = vpack.c.b16 %v153, %v151
      %v184 = vpack.c.b16 %v154, %v152
      %v185 = vpack.c.b16 %v157, %v155
      %v186 = vpack.c.b16 %v158, %v156
      %v187 = vpack.c.b16 %v161, %v159
      %v188 = vpack.c.b16 %v162, %v160
      %v189 = vpack.c.b16 %v165, %v163
      %v190 = vpack.c.b16 %v166, %v164
      %v191 = vpack.c.b16 %v169, %v167
      %v192 = vpack.c.b16 %v170, %v168
      %v193 = vpack.c.b16 %v173, %v171
      %v194 = vpack.c.b16 %v174, %v172
      %v195 = vpack.c.b16 %v177, %v175
      %v196 = vpack.c.b16 %v178, %v176
      %v197 = vpack.c.b16 %v181, %v179
      %v198 = vpack.c.b16 %v182, %v180
      %v247 = vunpack.c.l.b16 %v103
      %v248 = vunpack.c.h.b16 %v103
      %v249 = vunpack.c.l.b16 %v104
      %v250 = vunpack.c.h.b16 %v104
      %v251 = vunpack.c.l.b16 %v105
      %v252 = vunpack.c.h.b16 %v105
      %v253 = vunpack.c.l.b16 %v106
      %v254 = vunpack.c.h.b16 %v106
      %v255 = vunpack.c.l.b16 %v107
      %v256 = vunpack.c.h.b16 %v107
      %v257 = vunpack.c.l.b16 %v108
      %v258 = vunpack.c.h.b16 %v108
      %v259 = vunpack.c.l.b16 %v109
      %v260 = vunpack.c.h.b16 %v109
      %v261 = vunpack.c.l.b16 %v110
      %v262 = vunpack.c.h.b16 %v110
      %v263 = vunpack.c.l.b16 %v111
      %v264 = vunpack.c.h.b16 %v111
      %v265 = vunpack.c.l.b16 %v112
      %v266 = vunpack.c.h.b16 %v112
      %v267 = vunpack.c.l.b16 %v113
      %v268 = vunpack.c.h.b16 %v113
      %v269 = vunpack.c.l.b16 %v114
      %v270 = vunpack.c.h.b16 %v114
      %v271 = vunpack.c.l.b16 %v115
      %v272 = vunpack.c.h.b16 %v115
      %v273 = vunpack.c.l.b16 %v116
      %v274 = vunpack.c.h.b16 %v116
      %v275 = vunpack.c.l.b16 %v117
      %v276 = vunpack.c.h.b16 %v117
      %v277 = vunpack.c.l.b16 %v118
      %v278 = vunpack.c.h.b16 %v118
      %v279 = vunpack.c.l.b16 %v119
      %v280 = vunpack.c.h.b16 %v119
      %v281 = vunpack.c.l.b16 %v120
      %v282 = vunpack.c.h.b16 %v120
      %v283 = vunpack.c.l.b16 %v121
      %v284 = vunpack.c.h.b16 %v121
      %v285 = vunpack.c.l.b16 %v122
      %v286 = vunpack.c.h.b16 %v122
      %v287 = vunpack.c.l.b16 %v123
      %v288 = vunpack.c.h.b16 %v123
      %v289 = vunpack.c.l.b16 %v124
      %v290 = vunpack.c.h.b16 %v124
      %v291 = vunpack.c.l.b16 %v125
      %v292 = vunpack.c.h.b16 %v125
      %v293 = vunpack.c.l.b16 %v126
      %v294 = vunpack.c.h.b16 %v126
      %v295 = vunpack.c.l.b16 %v127
      %v296 = vunpack.c.h.b16 %v127
      %v297 = vunpack.c.l.b16 %v128
      %v298 = vunpack.c.h.b16 %v128
      %v299 = vunpack.c.l.b16 %v129
      %v300 = vunpack.c.h.b16 %v129
      %v301 = vunpack.c.l.b16 %v130
      %v302 = vunpack.c.h.b16 %v130
      %v303 = vunpack.c.l.b16 %v131
      %v304 = vunpack.c.h.b16 %v131
      %v305 = vunpack.c.l.b16 %v132
      %v306 = vunpack.c.h.b16 %v132
      %v307 = vunpack.c.l.b16 %v133
      %v308 = vunpack.c.h.b16 %v133
      %v309 = vunpack.c.l.b16 %v134
      %v310 = vunpack.c.h.b16 %v134
      %v311 = vpack.c.b16 %v249, %v247
      %v312 = vpack.c.b16 %v250, %v248
      %v313 = vpack.c.b16 %v253, %v251
      %v314 = vpack.c.b16 %v254, %v252
      %v315 = vpack.c.b16 %v257, %v255
      %v316 = vpack.c.b16 %v258, %v256
      %v317 = vpack.c.b16 %v261, %v259
      %v318 = vpack.c.b16 %v262, %v260
      %v319 = vpack.c.b16 %v265, %v263
      %v320 = vpack.c.b16 %v266, %v264
      %v321 = vpack.c.b16 %v269, %v267
      %v322 = vpack.c.b16 %v270, %v268
      %v323 = vpack.c.b16 %v273, %v271
      %v324 = vpack.c.b16 %v274, %v272
      %v325 = vpack.c.b16 %v277, %v275
      %v326 = vpack.c.b16 %v278, %v276
      %v327 = vpack.c.b16 %v281, %v279
      %v328 = vpack.c.b16 %v282, %v280
      %v329 = vpack.c.b16 %v285, %v283
      %v330 = vpack.c.b16 %v286, %v284
      %v331 = vpack.c.b16 %v289, %v287
      %v332 = vpack.c.b16 %v290, %v288
      %v333 = vpack.c.b16 %v293, %v291
      %v334 = vpack.c.b16 %v294, %v292
      %v335 = vpack.c.b16 %v297, %v295
      %v336 = vpack.c.b16 %v298, %v296
      %v337 = vpack.c.b16 %v301, %v299
      %v338 = vpack.c.b16 %v302, %v300
      %v339 = vpack.c.b16 %v305, %v303
      %v340 = vpack.c.b16 %v306, %v304
      %v341 = vpack.c.b16 %v309, %v307
      %v342 = vpack.c.b16 %v310, %v308
      %375 = vmatprep.subr.bf16.mxu0 %v326
      %376 = vmatpush1.bf16.msra.mxu0 %v325
      %377 = vmatprep.subr.bf16.mxu0 %v324
      %378 = vmatpush1.bf16.msra.mxu0 %v323
      %379 = vmatprep.subr.bf16.mxu0 %v322
      %380 = vmatpush1.bf16.msra.mxu0 %v321
      %381 = vmatprep.subr.bf16.mxu0 %v320
      %382 = vmatpush1.bf16.msra.mxu0 %v319
      %383 = vmatprep.subr.bf16.mxu0 %v318
      %384 = vmatpush1.bf16.msra.mxu0 %v317
      %385 = vmatprep.subr.bf16.mxu0 %v316
      %386 = vmatpush1.bf16.msra.mxu0 %v315
      %387 = vmatprep.subr.bf16.mxu0 %v314
      %388 = vmatpush1.bf16.msra.mxu0 %v313
      %389 = vmatprep.subr.bf16.mxu0 %v312
      %390 = vmatpush1.bf16.msra.mxu0 %v311
      %391 = vmatprep.subr.bf16.mxu0 %v342
      %392 = vmatpush2.bf16.msra.mxu0 %v341
      %393 = vmatprep.subr.bf16.mxu0 %v340
      %394 = vmatpush2.bf16.msra.mxu0 %v339
      %395 = vmatprep.subr.bf16.mxu0 %v338
      %396 = vmatpush2.bf16.msra.mxu0 %v337
      %397 = vmatprep.subr.bf16.mxu0 %v336
      %398 = vmatpush2.bf16.msra.mxu0 %v335
      %399 = vmatprep.subr.bf16.mxu0 %v334
      %400 = vmatpush2.bf16.msra.mxu0 %v333
      %401 = vmatprep.subr.bf16.mxu0 %v332
      %402 = vmatpush2.bf16.msra.mxu0 %v331
      %403 = vmatprep.subr.bf16.mxu0 %v330
      %404 = vmatpush2.bf16.msra.mxu0 %v329
      %405 = vmatprep.subr.bf16.mxu0 %v328
      %406 = vmatpush2.bf16.msra.mxu0 %v327
      %407 = vmatprep.mubr.bf16.mxu0 %v184
      %408 = vmatmul.mubr.bf16.gmra.mxu0 %v183
      %v409 = vpop.f32.mrf.mxu0
      %v410 = vadd.f32 0.0, %v409
      %v411 = vpop.f32.mrf.mxu0
      %v412 = vadd.f32 0.0, %v411
      %v413 = vpop.f32.mrf.mxu0
      %v414 = vadd.f32 0.0, %v413
      %v415 = vpop.f32.mrf.mxu0
      %v416 = vadd.f32 0.0, %v415
      %417 = vmatprep.mubr.bf16.mxu0 %v186
      %418 = vmatmul.mubr.bf16.gmra.mxu0 %v185
      %v419 = vpop.f32.mrf.mxu0
      %v420 = vadd.f32 0.0, %v419
      %v421 = vpop.f32.mrf.mxu0
      %v422 = vadd.f32 0.0, %v421
      %v423 = vpop.f32.mrf.mxu0
      %v424 = vadd.f32 0.0, %v423
      %v425 = vpop.f32.mrf.mxu0
      %v426 = vadd.f32 0.0, %v425
      %427 = vmatprep.mubr.bf16.mxu0 %v188
      %428 = vmatmul.mubr.bf16.gmra.mxu0 %v187
      %v429 = vpop.f32.mrf.mxu0
      %v430 = vadd.f32 0.0, %v429
      %v431 = vpop.f32.mrf.mxu0
      %v432 = vadd.f32 0.0, %v431
      %v433 = vpop.f32.mrf.mxu0
      %v434 = vadd.f32 0.0, %v433
      %v435 = vpop.f32.mrf.mxu0
      %v436 = vadd.f32 0.0, %v435
      %437 = vmatprep.mubr.bf16.mxu0 %v190
      %438 = vmatmul.mubr.bf16.gmra.mxu0 %v189
      %v439 = vpop.f32.mrf.mxu0
      %v440 = vadd.f32 0.0, %v439
      %v441 = vpop.f32.mrf.mxu0
      %v442 = vadd.f32 0.0, %v441
      %v443 = vpop.f32.mrf.mxu0
      %v444 = vadd.f32 0.0, %v443
      %v445 = vpop.f32.mrf.mxu0
      %v446 = vadd.f32 0.0, %v445
      %447 = vmatprep.mubr.bf16.mxu0 %v192
      %448 = vmatmul.mubr.bf16.gmra.mxu0 %v191
      %v449 = vpop.f32.mrf.mxu0
      %v450 = vadd.f32 0.0, %v449
      %v451 = vpop.f32.mrf.mxu0
      %v452 = vadd.f32 0.0, %v451
      %v453 = vpop.f32.mrf.mxu0
      %v454 = vadd.f32 0.0, %v453
      %v455 = vpop.f32.mrf.mxu0
      %v456 = vadd.f32 0.0, %v455
      %457 = vmatprep.mubr.bf16.mxu0 %v194
      %458 = vmatmul.mubr.bf16.gmra.mxu0 %v193
      %v459 = vpop.f32.mrf.mxu0
      %v460 = vadd.f32 0.0, %v459
      %v461 = vpop.f32.mrf.mxu0
      %v462 = vadd.f32 0.0, %v461
      %v463 = vpop.f32.mrf.mxu0
      %v464 = vadd.f32 0.0, %v463
      %v465 = vpop.f32.mrf.mxu0
      %v466 = vadd.f32 0.0, %v465
      %467 = vmatprep.mubr.bf16.mxu0 %v196
      %468 = vmatmul.mubr.bf16.gmra.mxu0 %v195
      %v469 = vpop.f32.mrf.mxu0
      %v470 = vadd.f32 0.0, %v469
      %v471 = vpop.f32.mrf.mxu0
      %v472 = vadd.f32 0.0, %v471
      %v473 = vpop.f32.mrf.mxu0
      %v474 = vadd.f32 0.0, %v473
      %v475 = vpop.f32.mrf.mxu0
      %v476 = vadd.f32 0.0, %v475
      %477 = vmatprep.mubr.bf16.mxu0 %v198
      %478 = vmatmul.mubr.bf16.gmra.mxu0 %v197
      %v479 = vpop.f32.mrf.mxu0
      %v480 = vadd.f32 0.0, %v479
      %v481 = vpop.f32.mrf.mxu0
      %v482 = vadd.f32 0.0, %v481
      %v483 = vpop.f32.mrf.mxu0
      %v484 = vadd.f32 0.0, %v483
      %v485 = vpop.f32.mrf.mxu0
      %v486 = vadd.f32 0.0, %v485
      %487 = vdwg.mxu0
      %v488 = vld [vmem:[%s1] sm:$0xf]
      %v489 = vld [vmem:[%s1 + $0x4] sm:$0xf]
      %v490 = vld [vmem:[%s1 + $0x8] sm:$0xf]
      %v491 = vld [vmem:[%s1 + $0xc] sm:$0xf]
      %v492 = vld [vmem:[%s1 + $0x10] sm:$0xf]
      %v493 = vld [vmem:[%s1 + $0x14] sm:$0xf]
      %v494 = vld [vmem:[%s1 + $0x18] sm:$0xf]
      %v495 = vld [vmem:[%s1 + $0x1c] sm:$0xf]
      %v496 = vld [vmem:[%s1 + $0x20] sm:$0xf]
      %v497 = vld [vmem:[%s1 + $0x24] sm:$0xf]
      %v498 = vld [vmem:[%s1 + $0x28] sm:$0xf]
      %v499 = vld [vmem:[%s1 + $0x2c] sm:$0xf]
      %v500 = vld [vmem:[%s1 + $0x30] sm:$0xf]
      %v501 = vld [vmem:[%s1 + $0x34] sm:$0xf]
      %v502 = vld [vmem:[%s1 + $0x38] sm:$0xf]
      %v503 = vld [vmem:[%s1 + $0x3c] sm:$0xf]
      %v504 = vpack.c.bf16 %v414, %v410
      %v505 = vpack.c.bf16 %v416, %v412
      %v506 = vpack.c.bf16 %v424, %v420
      %v507 = vpack.c.bf16 %v426, %v422
      %v508 = vpack.c.bf16 %v434, %v430
      %v509 = vpack.c.bf16 %v436, %v432
      %v510 = vpack.c.bf16 %v444, %v440
      %v511 = vpack.c.bf16 %v446, %v442
      %v512 = vpack.c.bf16 %v454, %v450
      %v513 = vpack.c.bf16 %v456, %v452
      %v514 = vpack.c.bf16 %v464, %v460
      %v515 = vpack.c.bf16 %v466, %v462
      %v516 = vpack.c.bf16 %v474, %v470
      %v517 = vpack.c.bf16 %v476, %v472
      %v518 = vpack.c.bf16 %v484, %v480
      %v519 = vpack.c.bf16 %v486, %v482
      %v520 = vld [vmem:[%s4] sm:$0x3]
      %v522 = vlaneseq
      %v523 = vshrl.u32 %v522, 7
      %v524 = vsub.s32 0, %v523
      %v525 = vrot.slane %v520, %v524
      %v526 = vlaneseq
      %v527 = vshrl.u32 %v526, 7
      %v528 = vsub.s32 1, %v527
      %v529 = vrot.slane %v520, %v528
      %v548 = vunpack.c.l.b16 %v488
      %v549 = vunpack.c.l.b16 %v489
      %v550 = vunpack.c.l.b16 %v490
      %v551 = vunpack.c.l.b16 %v491
      %v552 = vunpack.c.l.b16 %v492
      %v553 = vunpack.c.l.b16 %v493
      %v554 = vunpack.c.l.b16 %v494
      %v555 = vunpack.c.l.b16 %v495
      %v556 = vunpack.c.l.b16 %v496
      %v557 = vunpack.c.l.b16 %v497
      %v558 = vunpack.c.l.b16 %v498
      %v559 = vunpack.c.l.b16 %v499
      %v560 = vunpack.c.l.b16 %v500
      %v561 = vunpack.c.l.b16 %v501
      %v562 = vunpack.c.l.b16 %v502
      %v563 = vunpack.c.l.b16 %v503
      %v564 = vpack.c.b16 %v549, %v548
      %v565 = vpack.c.b16 %v551, %v550
      %v566 = vpack.c.b16 %v553, %v552
      %v567 = vpack.c.b16 %v555, %v554
      %v568 = vpack.c.b16 %v557, %v556
      %v569 = vpack.c.b16 %v559, %v558
      %v570 = vpack.c.b16 %v561, %v560
      %v571 = vpack.c.b16 %v563, %v562
      %580 = vmatprep.subr.bf16.mxu0 %v519
      %581 = vmatpush1.bf16.msra.mxu0 %v518
      %582 = vmatprep.subr.bf16.mxu0 %v517
      %583 = vmatpush1.bf16.msra.mxu0 %v516
      %584 = vmatprep.subr.bf16.mxu0 %v515
      %585 = vmatpush1.bf16.msra.mxu0 %v514
      %586 = vmatprep.subr.bf16.mxu0 %v513
      %587 = vmatpush1.bf16.msra.mxu0 %v512
      %588 = vmatprep.subr.bf16.mxu0 %v511
      %589 = vmatpush1.bf16.msra.mxu0 %v510
      %590 = vmatprep.subr.bf16.mxu0 %v509
      %591 = vmatpush1.bf16.msra.mxu0 %v508
      %592 = vmatprep.subr.bf16.mxu0 %v507
      %593 = vmatpush1.bf16.msra.mxu0 %v506
      %594 = vmatprep.subr.bf16.mxu0 %v505
      %595 = vmatpush1.bf16.msra.mxu0 %v504
      %596 = vmatprep.subr.bf16.mxu0 0
      %597 = vmatpush2.bf16.msra.mxu0 0
      %598 = vmatprep.subr.bf16.mxu0 0
      %599 = vmatpush2.bf16.msra.mxu0 0
      %600 = vmatprep.subr.bf16.mxu0 0
      %601 = vmatpush2.bf16.msra.mxu0 0
      %602 = vmatprep.subr.bf16.mxu0 0
      %603 = vmatpush2.bf16.msra.mxu0 0
      %604 = vmatprep.subr.bf16.mxu0 0
      %605 = vmatpush2.bf16.msra.mxu0 0
      %606 = vmatprep.subr.bf16.mxu0 0
      %607 = vmatpush2.bf16.msra.mxu0 0
      %608 = vmatprep.subr.bf16.mxu0 0
      %609 = vmatpush2.bf16.msra.mxu0 0
      %610 = vmatprep.subr.bf16.mxu0 0
      %611 = vmatpush2.bf16.msra.mxu0 0
      %612 = vmatprep.mubr.bf16.mxu0 0
      %613 = vmatmul.mubr.bf16.gmra.mxu0 %v564
      %v614 = vpop.f32.mrf.mxu0
      %v615 = vadd.f32 %v525, %v614
      %v616 = vpop.f32.mrf.mxu0
      %v617 = vadd.f32 %v529, %v616
      %v618 = vpop.f32.mrf.mxu0
      %v619 = vadd.f32 %v525, %v618
      %v620 = vpop.f32.mrf.mxu0
      %v621 = vadd.f32 %v529, %v620
      %622 = vmatprep.mubr.bf16.mxu0 0
      %623 = vmatmul.mubr.bf16.gmra.mxu0 %v565
      %v624 = vpop.f32.mrf.mxu0
      %v625 = vadd.f32 %v525, %v624
      %v626 = vpop.f32.mrf.mxu0
      %v627 = vadd.f32 %v529, %v626
      %v628 = vpop.f32.mrf.mxu0
      %v629 = vadd.f32 %v525, %v628
      %v630 = vpop.f32.mrf.mxu0
      %v631 = vadd.f32 %v529, %v630
      %632 = vmatprep.mubr.bf16.mxu0 0
      %633 = vmatmul.mubr.bf16.gmra.mxu0 %v566
      %v634 = vpop.f32.mrf.mxu0
      %v635 = vadd.f32 %v525, %v634
      %v636 = vpop.f32.mrf.mxu0
      %v637 = vadd.f32 %v529, %v636
      %v638 = vpop.f32.mrf.mxu0
      %v639 = vadd.f32 %v525, %v638
      %v640 = vpop.f32.mrf.mxu0
      %v641 = vadd.f32 %v529, %v640
      %642 = vmatprep.mubr.bf16.mxu0 0
      %643 = vmatmul.mubr.bf16.gmra.mxu0 %v567
      %v644 = vpop.f32.mrf.mxu0
      %v645 = vadd.f32 %v525, %v644
      %v646 = vpop.f32.mrf.mxu0
      %v647 = vadd.f32 %v529, %v646
      %v648 = vpop.f32.mrf.mxu0
      %v649 = vadd.f32 %v525, %v648
      %v650 = vpop.f32.mrf.mxu0
      %v651 = vadd.f32 %v529, %v650
      %652 = vmatprep.mubr.bf16.mxu0 0
      %653 = vmatmul.mubr.bf16.gmra.mxu0 %v568
      %v654 = vpop.f32.mrf.mxu0
      %v655 = vadd.f32 %v525, %v654
      %v656 = vpop.f32.mrf.mxu0
      %v657 = vadd.f32 %v529, %v656
      %v658 = vpop.f32.mrf.mxu0
      %v659 = vadd.f32 %v525, %v658
      %v660 = vpop.f32.mrf.mxu0
      %v661 = vadd.f32 %v529, %v660
      %662 = vmatprep.mubr.bf16.mxu0 0
      %663 = vmatmul.mubr.bf16.gmra.mxu0 %v569
      %v664 = vpop.f32.mrf.mxu0
      %v665 = vadd.f32 %v525, %v664
      %v666 = vpop.f32.mrf.mxu0
      %v667 = vadd.f32 %v529, %v666
      %v668 = vpop.f32.mrf.mxu0
      %v669 = vadd.f32 %v525, %v668
      %v670 = vpop.f32.mrf.mxu0
      %v671 = vadd.f32 %v529, %v670
      %672 = vmatprep.mubr.bf16.mxu0 0
      %673 = vmatmul.mubr.bf16.gmra.mxu0 %v570
      %v674 = vpop.f32.mrf.mxu0
      %v675 = vadd.f32 %v525, %v674
      %v676 = vpop.f32.mrf.mxu0
      %v677 = vadd.f32 %v529, %v676
      %v678 = vpop.f32.mrf.mxu0
      %v679 = vadd.f32 %v525, %v678
      %v680 = vpop.f32.mrf.mxu0
      %v681 = vadd.f32 %v529, %v680
      %682 = vmatprep.mubr.bf16.mxu0 0
      %683 = vmatmul.mubr.bf16.gmra.mxu0 %v571
      %v684 = vpop.f32.mrf.mxu0
      %v685 = vadd.f32 %v525, %v684
      %v686 = vpop.f32.mrf.mxu0
      %v687 = vadd.f32 %v529, %v686
      %v688 = vpop.f32.mrf.mxu0
      %v689 = vadd.f32 %v525, %v688
      %v690 = vpop.f32.mrf.mxu0
      %v691 = vadd.f32 %v529, %v690
      %692 = vdwg.mxu0
      %693 = vst [vmem:[#allocation2] sm:$0xff] %v615
      %694 = vst [vmem:[#allocation2 + $0x8] sm:$0xff] %v617
      %695 = vst [vmem:[#allocation2 + $0x10] sm:$0xff] %v619
      %696 = vst [vmem:[#allocation2 + $0x18] sm:$0xff] %v621
      %697 = vst [vmem:[#allocation2 + $0x20] sm:$0xff] %v625
      %698 = vst [vmem:[#allocation2 + $0x28] sm:$0xff] %v627
      %699 = vst [vmem:[#allocation2 + $0x30] sm:$0xff] %v629
      %700 = vst [vmem:[#allocation2 + $0x38] sm:$0xff] %v631
      %701 = vst [vmem:[#allocation2 + $0x40] sm:$0xff] %v635
      %702 = vst [vmem:[#allocation2 + $0x48] sm:$0xff] %v637
      %703 = vst [vmem:[#allocation2 + $0x50] sm:$0xff] %v639
      %704 = vst [vmem:[#allocation2 + $0x58] sm:$0xff] %v641
      %705 = vst [vmem:[#allocation2 + $0x60] sm:$0xff] %v645
      %706 = vst [vmem:[#allocation2 + $0x68] sm:$0xff] %v647
      %707 = vst [vmem:[#allocation2 + $0x70] sm:$0xff] %v649
      %708 = vst [vmem:[#allocation2 + $0x78] sm:$0xff] %v651
      %709 = vst [vmem:[#allocation2 + $0x80] sm:$0xff] %v655
      %710 = vst [vmem:[#allocation2 + $0x88] sm:$0xff] %v657
      %711 = vst [vmem:[#allocation2 + $0x90] sm:$0xff] %v659
      %712 = vst [vmem:[#allocation2 + $0x98] sm:$0xff] %v661
      %713 = vst [vmem:[#allocation2 + $0xa0] sm:$0xff] %v665
      %714 = vst [vmem:[#allocation2 + $0xa8] sm:$0xff] %v667
      %715 = vst [vmem:[#allocation2 + $0xb0] sm:$0xff] %v669
      %716 = vst [vmem:[#allocation2 + $0xb8] sm:$0xff] %v671
      %717 = vst [vmem:[#allocation2 + $0xc0] sm:$0xff] %v675
      %718 = vst [vmem:[#allocation2 + $0xc8] sm:$0xff] %v677
      %719 = vst [vmem:[#allocation2 + $0xd0] sm:$0xff] %v679
      %720 = vst [vmem:[#allocation2 + $0xd8] sm:$0xff] %v681
      %721 = vst [vmem:[#allocation2 + $0xe0] sm:$0xff] %v685
      %722 = vst [vmem:[#allocation2 + $0xe8] sm:$0xff] %v687
      %723 = vst [vmem:[#allocation2 + $0xf0] sm:$0xff] %v689
      %724 = vst [vmem:[#allocation2 + $0xf8] sm:$0xff] %v691
    $region57: #{tpu_custom_call.1} parent=1 // pred_fallthru
      _
    %s725 = smul.u32 0, 128
    loop: start=0, step=1, limit=128
    $region58: #{tpu_custom_call.1} parent=1 // loop_pre_header
      _
    $region59: #{tpu_custom_call.1} parent=1 // loop_header
      %s727 = sphi 0, %s731
      %p728 = scmp.ge.s32.totalorder %s727, 128
    $region60: #{tpu_custom_call.1} parent=1 // loop_header_branch
      %730 = sbr.rel (%p728) target = $region64
    $region61: #{tpu_custom_call.1} parent=1 // loop_body
      %s732 = sadd.s32 %s725, %s727
      %s733 = sld [smem:[#allocation5 + %s732]]
      %s734 = sadd.s32 %s725, 128
      %s735 = sadd.s32 %s734, %s727
      %s736 = sld [smem:[#allocation5 + %s735]]
      %s737 = sshra.s32 %s736, 3
      %s738 = sand.u32 %s736, 7
      %s739 = sshra.s32 %s736, 3
      %s740 = sand.u32 %s736, 7
      %s741 = smul.u32 %s737, 2
      %s742 = smul.u32 %s741, 8
      %s743 = sadd.s32 %s742, %s740
      %s744 = scalar_lea.vmem [#allocation2], %s743
      %v745 = vld [vmem:[%s744] ss:$8 sm:$0x3]
      %s746 = sshra.s32 %s733, 3
      %s747 = sand.u32 %s733, 7
      %s748 = sshra.s32 %s733, 3
      %s749 = sand.u32 %s733, 7
      %s750 = smul.u32 %s746, 2
      %s751 = smul.u32 %s750, 8
      %s752 = sadd.s32 %s751, %s749
      %s753 = scalar_lea.vmem [#allocation2], %s752
      %v754 = vld [vmem:[%s753] ss:$8 sm:$0x3]
      %v755 = vsub.f32 %v745, %v754
      %v756 = vlaneseq
      %vm757 = vcmp.ge.s32.totalorder %v756, 0
      %vm758 = vcmp.lt.s32.totalorder %v756, 256
      %vm759 = vmand %vm757, %vm758
      %s760 = sshra.s32 %s727, 3
      %s761 = sand.u32 %s727, 7
      %s762 = sshra.s32 %s727, 3
      %s763 = sand.u32 %s727, 7
      %s764 = smul.u32 %s760, 2
      %s765 = smul.u32 %s764, 8
      %s766 = sadd.s32 %s765, %s763
      %s767 = scalar_lea.vmem [#allocation3], %s766
      %768 = vst.msk [vmem:[%s767] ss:$8 sm:$0x3] %vm759, %v755
      %769 = vst.msk [vmem:[%s767] ss:$8 sm:$0x0] %vm759, %v755
    $region62: #{tpu_custom_call.1} parent=1 // loop_footer
      %s731 = sadd.s32 1, %s727
    $region63: #{tpu_custom_call.1} parent=1 // loop_footer_branch
      %726 = sbr.rel target = $region59
    $region64: #{tpu_custom_call.1} parent=1 // loop_exit
      _
    %v770 = vld [vmem:[#allocation3] sm:$0xff]
    %v771 = vld [vmem:[#allocation3 + $0x8] sm:$0xff]
    %v772 = vld [vmem:[#allocation3 + $0x10] sm:$0xff]
    %v773 = vld [vmem:[#allocation3 + $0x18] sm:$0xff]
    %v774 = vld [vmem:[#allocation3 + $0x20] sm:$0xff]
    %v775 = vld [vmem:[#allocation3 + $0x28] sm:$0xff]
    %v776 = vld [vmem:[#allocation3 + $0x30] sm:$0xff]
    %v777 = vld [vmem:[#allocation3 + $0x38] sm:$0xff]
    %v778 = vld [vmem:[#allocation3 + $0x40] sm:$0xff]
    %v779 = vld [vmem:[#allocation3 + $0x48] sm:$0xff]
    %v780 = vld [vmem:[#allocation3 + $0x50] sm:$0xff]
    %v781 = vld [vmem:[#allocation3 + $0x58] sm:$0xff]
    %v782 = vld [vmem:[#allocation3 + $0x60] sm:$0xff]
    %v783 = vld [vmem:[#allocation3 + $0x68] sm:$0xff]
    %v784 = vld [vmem:[#allocation3 + $0x70] sm:$0xff]
    %v785 = vld [vmem:[#allocation3 + $0x78] sm:$0xff]
    %v786 = vld [vmem:[#allocation3 + $0x80] sm:$0xff]
    %v787 = vld [vmem:[#allocation3 + $0x88] sm:$0xff]
    %v788 = vld [vmem:[#allocation3 + $0x90] sm:$0xff]
    %v789 = vld [vmem:[#allocation3 + $0x98] sm:$0xff]
    %v790 = vld [vmem:[#allocation3 + $0xa0] sm:$0xff]
    %v791 = vld [vmem:[#allocation3 + $0xa8] sm:$0xff]
    %v792 = vld [vmem:[#allocation3 + $0xb0] sm:$0xff]
    %v793 = vld [vmem:[#allocation3 + $0xb8] sm:$0xff]
    %v794 = vld [vmem:[#allocation3 + $0xc0] sm:$0xff]
    %v795 = vld [vmem:[#allocation3 + $0xc8] sm:$0xff]
    %v796 = vld [vmem:[#allocation3 + $0xd0] sm:$0xff]
    %v797 = vld [vmem:[#allocation3 + $0xd8] sm:$0xff]
    %v798 = vld [vmem:[#allocation3 + $0xe0] sm:$0xff]
    %v799 = vld [vmem:[#allocation3 + $0xe8] sm:$0xff]
    %v800 = vld [vmem:[#allocation3 + $0xf0] sm:$0xff]
    %v801 = vld [vmem:[#allocation3 + $0xf8] sm:$0xff]
    %v802 = vpack.c.bf16 %v772, %v770
    %v803 = vpack.c.bf16 %v773, %v771
    %v804 = vpack.c.bf16 %v776, %v774
    %v805 = vpack.c.bf16 %v777, %v775
    %v806 = vpack.c.bf16 %v780, %v778
    %v807 = vpack.c.bf16 %v781, %v779
    %v808 = vpack.c.bf16 %v784, %v782
    %v809 = vpack.c.bf16 %v785, %v783
    %v810 = vpack.c.bf16 %v788, %v786
    %v811 = vpack.c.bf16 %v789, %v787
    %v812 = vpack.c.bf16 %v792, %v790
    %v813 = vpack.c.bf16 %v793, %v791
    %v814 = vpack.c.bf16 %v796, %v794
    %v815 = vpack.c.bf16 %v797, %v795
    %v816 = vpack.c.bf16 %v800, %v798
    %v817 = vpack.c.bf16 %v801, %v799
    %v818 = vld [vmem:[#allocation11] sm:$0xf]
    %v819 = vld [vmem:[#allocation11 + $0x4] sm:$0xf]
    %v820 = vld [vmem:[#allocation11 + $0x8] sm:$0xf]
    %v821 = vld [vmem:[#allocation11 + $0xc] sm:$0xf]
    %v822 = vld [vmem:[#allocation11 + $0x10] sm:$0xf]
    %v823 = vld [vmem:[#allocation11 + $0x14] sm:$0xf]
    %v824 = vld [vmem:[#allocation11 + $0x18] sm:$0xf]
    %v825 = vld [vmem:[#allocation11 + $0x1c] sm:$0xf]
    %v826 = vld [vmem:[#allocation11 + $0x20] sm:$0xf]
    %v827 = vld [vmem:[#allocation11 + $0x24] sm:$0xf]
    %v828 = vld [vmem:[#allocation11 + $0x28] sm:$0xf]
    %v829 = vld [vmem:[#allocation11 + $0x2c] sm:$0xf]
    %v830 = vld [vmem:[#allocation11 + $0x30] sm:$0xf]
    %v831 = vld [vmem:[#allocation11 + $0x34] sm:$0xf]
    %v832 = vld [vmem:[#allocation11 + $0x38] sm:$0xf]
    %v833 = vld [vmem:[#allocation11 + $0x3c] sm:$0xf]
    %v834 = vld [vmem:[#allocation11 + $0x40] sm:$0xf]
    %v835 = vld [vmem:[#allocation11 + $0x44] sm:$0xf]
    %v836 = vld [vmem:[#allocation11 + $0x48] sm:$0xf]
    %v837 = vld [vmem:[#allocation11 + $0x4c] sm:$0xf]
    %v838 = vld [vmem:[#allocation11 + $0x50] sm:$0xf]
    %v839 = vld [vmem:[#allocation11 + $0x54] sm:$0xf]
    %v840 = vld [vmem:[#allocation11 + $0x58] sm:$0xf]
    %v841 = vld [vmem:[#allocation11 + $0x5c] sm:$0xf]
    %v842 = vld [vmem:[#allocation11 + $0x60] sm:$0xf]
    %v843 = vld [vmem:[#allocation11 + $0x64] sm:$0xf]
    %v844 = vld [vmem:[#allocation11 + $0x68] sm:$0xf]
    %v845 = vld [vmem:[#allocation11 + $0x6c] sm:$0xf]
    %v846 = vld [vmem:[#allocation11 + $0x70] sm:$0xf]
    %v847 = vld [vmem:[#allocation11 + $0x74] sm:$0xf]
    %v848 = vld [vmem:[#allocation11 + $0x78] sm:$0xf]
    %v849 = vld [vmem:[#allocation11 + $0x7c] sm:$0xf]
    %v850 = vld [vmem:[%s6] sm:$0x1]
    %v852 = vlaneseq
    %v853 = vshrl.u32 %v852, 7
    %v854 = vsub.s32 0, %v853
    %v855 = vrot.slane %v850, %v854
    %v889 = vunpack.c.l.b16 %v818
    %v890 = vunpack.c.l.b16 %v819
    %v891 = vunpack.c.l.b16 %v820
    %v892 = vunpack.c.l.b16 %v821
    %v893 = vunpack.c.l.b16 %v822
    %v894 = vunpack.c.l.b16 %v823
    %v895 = vunpack.c.l.b16 %v824
    %v896 = vunpack.c.l.b16 %v825
    %v897 = vunpack.c.l.b16 %v826
    %v898 = vunpack.c.l.b16 %v827
    %v899 = vunpack.c.l.b16 %v828
    %v900 = vunpack.c.l.b16 %v829
    %v901 = vunpack.c.l.b16 %v830
    %v902 = vunpack.c.l.b16 %v831
    %v903 = vunpack.c.l.b16 %v832
    %v904 = vunpack.c.l.b16 %v833
    %v905 = vunpack.c.l.b16 %v834
    %v906 = vunpack.c.l.b16 %v835
    %v907 = vunpack.c.l.b16 %v836
    %v908 = vunpack.c.l.b16 %v837
    %v909 = vunpack.c.l.b16 %v838
    %v910 = vunpack.c.l.b16 %v839
    %v911 = vunpack.c.l.b16 %v840
    %v912 = vunpack.c.l.b16 %v841
    %v913 = vunpack.c.l.b16 %v842
    %v914 = vunpack.c.l.b16 %v843
    %v915 = vunpack.c.l.b16 %v844
    %v916 = vunpack.c.l.b16 %v845
    %v917 = vunpack.c.l.b16 %v846
    %v918 = vunpack.c.l.b16 %v847
    %v919 = vunpack.c.l.b16 %v848
    %v920 = vunpack.c.l.b16 %v849
    %v921 = vpack.c.b16 %v890, %v889
    %v922 = vpack.c.b16 %v892, %v891
    %v923 = vpack.c.b16 %v894, %v893
    %v924 = vpack.c.b16 %v896, %v895
    %v925 = vpack.c.b16 %v898, %v897
    %v926 = vpack.c.b16 %v900, %v899
    %v927 = vpack.c.b16 %v902, %v901
    %v928 = vpack.c.b16 %v904, %v903
    %v929 = vpack.c.b16 %v906, %v905
    %v930 = vpack.c.b16 %v908, %v907
    %v931 = vpack.c.b16 %v910, %v909
    %v932 = vpack.c.b16 %v912, %v911
    %v933 = vpack.c.b16 %v914, %v913
    %v934 = vpack.c.b16 %v916, %v915
    %v935 = vpack.c.b16 %v918, %v917
    %v936 = vpack.c.b16 %v920, %v919
    %953 = vmatprep.subr.bf16.mxu0 0
    %954 = vmatpush1.bf16.msra.mxu0 %v928
    %955 = vmatprep.subr.bf16.mxu0 0
    %956 = vmatpush1.bf16.msra.mxu0 %v927
    %957 = vmatprep.subr.bf16.mxu0 0
    %958 = vmatpush1.bf16.msra.mxu0 %v926
    %959 = vmatprep.subr.bf16.mxu0 0
    %960 = vmatpush1.bf16.msra.mxu0 %v925
    %961 = vmatprep.subr.bf16.mxu0 0
    %962 = vmatpush1.bf16.msra.mxu0 %v924
    %963 = vmatprep.subr.bf16.mxu0 0
    %964 = vmatpush1.bf16.msra.mxu0 %v923
    %965 = vmatprep.subr.bf16.mxu0 0
    %966 = vmatpush1.bf16.msra.mxu0 %v922
    %967 = vmatprep.subr.bf16.mxu0 0
    %968 = vmatpush1.bf16.msra.mxu0 %v921
    %969 = vmatprep.subr.bf16.mxu0 0
    %970 = vmatpush2.bf16.msra.mxu0 %v936
    %971 = vmatprep.subr.bf16.mxu0 0
    %972 = vmatpush2.bf16.msra.mxu0 %v935
    %973 = vmatprep.subr.bf16.mxu0 0
    %974 = vmatpush2.bf16.msra.mxu0 %v934
    %975 = vmatprep.subr.bf16.mxu0 0
    %976 = vmatpush2.bf16.msra.mxu0 %v933
    %977 = vmatprep.subr.bf16.mxu0 0
    %978 = vmatpush2.bf16.msra.mxu0 %v932
    %979 = vmatprep.subr.bf16.mxu0 0
    %980 = vmatpush2.bf16.msra.mxu0 %v931
    %981 = vmatprep.subr.bf16.mxu0 0
    %982 = vmatpush2.bf16.msra.mxu0 %v930
    %983 = vmatprep.subr.bf16.mxu0 0
    %984 = vmatpush2.bf16.msra.mxu0 %v929
    %985 = vmatprep.mubr.bf16.mxu0 %v803
    %986 = vmatmul.mubr.bf16.gmra.mxu0 %v802
    %v987 = vpop.f32.mrf.mxu0
    %v988 = vadd.f32 %v855, %v987
    %v989 = vpop.f32.mrf.mxu0
    %v990 = vpop.f32.mrf.mxu0
    %v991 = vadd.f32 %v855, %v990
    %v992 = vpop.f32.mrf.mxu0
    %993 = vmatprep.mubr.bf16.mxu0 %v805
    %994 = vmatmul.mubr.bf16.gmra.mxu0 %v804
    %v995 = vpop.f32.mrf.mxu0
    %v996 = vadd.f32 %v855, %v995
    %v997 = vpop.f32.mrf.mxu0
    %v998 = vpop.f32.mrf.mxu0
    %v999 = vadd.f32 %v855, %v998
    %v1000 = vpop.f32.mrf.mxu0
    %1001 = vmatprep.mubr.bf16.mxu0 %v807
    %1002 = vmatmul.mubr.bf16.gmra.mxu0 %v806
    %v1003 = vpop.f32.mrf.mxu0
    %v1004 = vadd.f32 %v855, %v1003
    %v1005 = vpop.f32.mrf.mxu0
    %v1006 = vpop.f32.mrf.mxu0
    %v1007 = vadd.f32 %v855, %v1006
    %v1008 = vpop.f32.mrf.mxu0
    %1009 = vmatprep.mubr.bf16.mxu0 %v809
    %1010 = vmatmul.mubr.bf16.gmra.mxu0 %v808
    %v1011 = vpop.f32.mrf.mxu0
    %v1012 = vadd.f32 %v855, %v1011
    %v1013 = vpop.f32.mrf.mxu0
    %v1014 = vpop.f32.mrf.mxu0
    %v1015 = vadd.f32 %v855, %v1014
    %v1016 = vpop.f32.mrf.mxu0
    %1017 = vmatprep.mubr.bf16.mxu0 %v811
    %1018 = vmatmul.mubr.bf16.gmra.mxu0 %v810
    %v1019 = vpop.f32.mrf.mxu0
    %v1020 = vadd.f32 %v855, %v1019
    %v1021 = vpop.f32.mrf.mxu0
    %v1022 = vpop.f32.mrf.mxu0
    %v1023 = vadd.f32 %v855, %v1022
    %v1024 = vpop.f32.mrf.mxu0
    %1025 = vmatprep.mubr.bf16.mxu0 %v813
    %1026 = vmatmul.mubr.bf16.gmra.mxu0 %v812
    %v1027 = vpop.f32.mrf.mxu0
    %v1028 = vadd.f32 %v855, %v1027
    %v1029 = vpop.f32.mrf.mxu0
    %v1030 = vpop.f32.mrf.mxu0
    %v1031 = vadd.f32 %v855, %v1030
    %v1032 = vpop.f32.mrf.mxu0
    %1033 = vmatprep.mubr.bf16.mxu0 %v815
    %1034 = vmatmul.mubr.bf16.gmra.mxu0 %v814
    %v1035 = vpop.f32.mrf.mxu0
    %v1036 = vadd.f32 %v855, %v1035
    %v1037 = vpop.f32.mrf.mxu0
    %v1038 = vpop.f32.mrf.mxu0
    %v1039 = vadd.f32 %v855, %v1038
    %v1040 = vpop.f32.mrf.mxu0
    %1041 = vmatprep.mubr.bf16.mxu0 %v817
    %1042 = vmatmul.mubr.bf16.gmra.mxu0 %v816
    %v1043 = vpop.f32.mrf.mxu0
    %v1044 = vadd.f32 %v855, %v1043
    %v1045 = vpop.f32.mrf.mxu0
    %v1046 = vpop.f32.mrf.mxu0
    %v1047 = vadd.f32 %v855, %v1046
    %v1048 = vpop.f32.mrf.mxu0
    %1049 = vdwg.mxu0
    %v1050 = vmax.f32 %v988, 0.0
    %v1051 = vmax.f32 %v991, 0.0
    %v1052 = vmax.f32 %v996, 0.0
    %v1053 = vmax.f32 %v999, 0.0
    %v1054 = vmax.f32 %v1004, 0.0
    %v1055 = vmax.f32 %v1007, 0.0
    %v1056 = vmax.f32 %v1012, 0.0
    %v1057 = vmax.f32 %v1015, 0.0
    %v1058 = vmax.f32 %v1020, 0.0
    %v1059 = vmax.f32 %v1023, 0.0
    %v1060 = vmax.f32 %v1028, 0.0
    %v1061 = vmax.f32 %v1031, 0.0
    %v1062 = vmax.f32 %v1036, 0.0
    %v1063 = vmax.f32 %v1039, 0.0
    %v1064 = vmax.f32 %v1044, 0.0
    %v1065 = vmax.f32 %v1047, 0.0
    %v1066 = vpack.c.bf16 %v1051, %v1050
    %v1067 = vpack.c.bf16 %v1053, %v1052
    %v1068 = vpack.c.bf16 %v1055, %v1054
    %v1069 = vpack.c.bf16 %v1057, %v1056
    %v1070 = vpack.c.bf16 %v1059, %v1058
    %v1071 = vpack.c.bf16 %v1061, %v1060
    %v1072 = vpack.c.bf16 %v1063, %v1062
    %v1073 = vpack.c.bf16 %v1065, %v1064
    %v1074 = vld [vmem:[%s7] sm:$0xf]
    %v1075 = vld [vmem:[%s7 + $0x4] sm:$0xf]
    %v1076 = vld [vmem:[%s7 + $0x8] sm:$0xf]
    %v1077 = vld [vmem:[%s7 + $0xc] sm:$0xf]
    %v1078 = vld [vmem:[%s7 + $0x10] sm:$0xf]
    %v1079 = vld [vmem:[%s7 + $0x14] sm:$0xf]
    %v1080 = vld [vmem:[%s7 + $0x18] sm:$0xf]
    %v1081 = vld [vmem:[%s7 + $0x1c] sm:$0xf]
    %v1082 = vld [vmem:[%s7 + $0x20] sm:$0xf]
    %v1083 = vld [vmem:[%s7 + $0x24] sm:$0xf]
    %v1084 = vld [vmem:[%s7 + $0x28] sm:$0xf]
    %v1085 = vld [vmem:[%s7 + $0x2c] sm:$0xf]
    %v1086 = vld [vmem:[%s7 + $0x30] sm:$0xf]
    %v1087 = vld [vmem:[%s7 + $0x34] sm:$0xf]
    %v1088 = vld [vmem:[%s7 + $0x38] sm:$0xf]
    %v1089 = vld [vmem:[%s7 + $0x3c] sm:$0xf]
    %v1090 = vld [vmem:[%s8] sm:$0x1]
    %v1092 = vlaneseq
    %v1093 = vshrl.u32 %v1092, 7
    %v1094 = vsub.s32 0, %v1093
    %v1095 = vrot.slane %v1090, %v1094
    %v1113 = vunpack.c.l.b16 %v1074
    %v1114 = vunpack.c.l.b16 %v1075
    %v1115 = vunpack.c.l.b16 %v1076
    %v1116 = vunpack.c.l.b16 %v1077
    %v1117 = vunpack.c.l.b16 %v1078
    %v1118 = vunpack.c.l.b16 %v1079
    %v1119 = vunpack.c.l.b16 %v1080
    %v1120 = vunpack.c.l.b16 %v1081
    %v1121 = vunpack.c.l.b16 %v1082
    %v1122 = vunpack.c.l.b16 %v1083
    %v1123 = vunpack.c.l.b16 %v1084
    %v1124 = vunpack.c.l.b16 %v1085
    %v1125 = vunpack.c.l.b16 %v1086
    %v1126 = vunpack.c.l.b16 %v1087
    %v1127 = vunpack.c.l.b16 %v1088
    %v1128 = vunpack.c.l.b16 %v1089
    %v1129 = vpack.c.b16 %v1114, %v1113
    %v1130 = vpack.c.b16 %v1116, %v1115
    %v1131 = vpack.c.b16 %v1118, %v1117
    %v1132 = vpack.c.b16 %v1120, %v1119
    %v1133 = vpack.c.b16 %v1122, %v1121
    %v1134 = vpack.c.b16 %v1124, %v1123
    %v1135 = vpack.c.b16 %v1126, %v1125
    %v1136 = vpack.c.b16 %v1128, %v1127
    %1145 = vmatprep.subr.bf16.mxu0 0
    %1146 = vmatpush1.bf16.msra.mxu0 %v1136
    %1147 = vmatprep.subr.bf16.mxu0 0
    %1148 = vmatpush1.bf16.msra.mxu0 %v1135
    %1149 = vmatprep.subr.bf16.mxu0 0
    %1150 = vmatpush1.bf16.msra.mxu0 %v1134
    %1151 = vmatprep.subr.bf16.mxu0 0
    %1152 = vmatpush1.bf16.msra.mxu0 %v1133
    %1153 = vmatprep.subr.bf16.mxu0 0
    %1154 = vmatpush1.bf16.msra.mxu0 %v1132
    %1155 = vmatprep.subr.bf16.mxu0 0
    %1156 = vmatpush1.bf16.msra.mxu0 %v1131
    %1157 = vmatprep.subr.bf16.mxu0 0
    %1158 = vmatpush1.bf16.msra.mxu0 %v1130
    %1159 = vmatprep.subr.bf16.mxu0 0
    %1160 = vmatpush1.bf16.msra.mxu0 %v1129
    %1161 = vmatprep.subr.bf16.mxu0 0
    %1162 = vmatpush2.bf16.msra.mxu0 0
    %1163 = vmatprep.subr.bf16.mxu0 0
    %1164 = vmatpush2.bf16.msra.mxu0 0
    %1165 = vmatprep.subr.bf16.mxu0 0
    %1166 = vmatpush2.bf16.msra.mxu0 0
    %1167 = vmatprep.subr.bf16.mxu0 0
    %1168 = vmatpush2.bf16.msra.mxu0 0
    %1169 = vmatprep.subr.bf16.mxu0 0
    %1170 = vmatpush2.bf16.msra.mxu0 0
    %1171 = vmatprep.subr.bf16.mxu0 0
    %1172 = vmatpush2.bf16.msra.mxu0 0
    %1173 = vmatprep.subr.bf16.mxu0 0
    %1174 = vmatpush2.bf16.msra.mxu0 0
    %1175 = vmatprep.subr.bf16.mxu0 0
    %1176 = vmatpush2.bf16.msra.mxu0 0
    %1177 = vmatprep.mubr.bf16.mxu0 0
    %1178 = vmatmul.mubr.bf16.gmra.mxu0 %v1066
    %v1179 = vpop.f32.mrf.mxu0
    %v1180 = vadd.f32 %v1095, %v1179
    %v1181 = vpop.f32.mrf.mxu0
    %v1182 = vpop.f32.mrf.mxu0
    %v1183 = vadd.f32 %v1095, %v1182
    %v1184 = vpop.f32.mrf.mxu0
    %1185 = vmatprep.mubr.bf16.mxu0 0
    %1186 = vmatmul.mubr.bf16.gmra.mxu0 %v1067
    %v1187 = vpop.f32.mrf.mxu0
    %v1188 = vadd.f32 %v1095, %v1187
    %v1189 = vpop.f32.mrf.mxu0
    %v1190 = vpop.f32.mrf.mxu0
    %v1191 = vadd.f32 %v1095, %v1190
    %v1192 = vpop.f32.mrf.mxu0
    %1193 = vmatprep.mubr.bf16.mxu0 0
    %1194 = vmatmul.mubr.bf16.gmra.mxu0 %v1068
    %v1195 = vpop.f32.mrf.mxu0
    %v1196 = vadd.f32 %v1095, %v1195
    %v1197 = vpop.f32.mrf.mxu0
    %v1198 = vpop.f32.mrf.mxu0
    %v1199 = vadd.f32 %v1095, %v1198
    %v1200 = vpop.f32.mrf.mxu0
    %1201 = vmatprep.mubr.bf16.mxu0 0
    %1202 = vmatmul.mubr.bf16.gmra.mxu0 %v1069
    %v1203 = vpop.f32.mrf.mxu0
    %v1204 = vadd.f32 %v1095, %v1203
    %v1205 = vpop.f32.mrf.mxu0
    %v1206 = vpop.f32.mrf.mxu0
    %v1207 = vadd.f32 %v1095, %v1206
    %v1208 = vpop.f32.mrf.mxu0
    %1209 = vmatprep.mubr.bf16.mxu0 0
    %1210 = vmatmul.mubr.bf16.gmra.mxu0 %v1070
    %v1211 = vpop.f32.mrf.mxu0
    %v1212 = vadd.f32 %v1095, %v1211
    %v1213 = vpop.f32.mrf.mxu0
    %v1214 = vpop.f32.mrf.mxu0
    %v1215 = vadd.f32 %v1095, %v1214
    %v1216 = vpop.f32.mrf.mxu0
    %1217 = vmatprep.mubr.bf16.mxu0 0
    %1218 = vmatmul.mubr.bf16.gmra.mxu0 %v1071
    %v1219 = vpop.f32.mrf.mxu0
    %v1220 = vadd.f32 %v1095, %v1219
    %v1221 = vpop.f32.mrf.mxu0
    %v1222 = vpop.f32.mrf.mxu0
    %v1223 = vadd.f32 %v1095, %v1222
    %v1224 = vpop.f32.mrf.mxu0
    %1225 = vmatprep.mubr.bf16.mxu0 0
    %1226 = vmatmul.mubr.bf16.gmra.mxu0 %v1072
    %v1227 = vpop.f32.mrf.mxu0
    %v1228 = vadd.f32 %v1095, %v1227
    %v1229 = vpop.f32.mrf.mxu0
    %v1230 = vpop.f32.mrf.mxu0
    %v1231 = vadd.f32 %v1095, %v1230
    %v1232 = vpop.f32.mrf.mxu0
    %1233 = vmatprep.mubr.bf16.mxu0 0
    %1234 = vmatmul.mubr.bf16.gmra.mxu0 %v1073
    %v1235 = vpop.f32.mrf.mxu0
    %v1236 = vadd.f32 %v1095, %v1235
    %v1237 = vpop.f32.mrf.mxu0
    %v1238 = vpop.f32.mrf.mxu0
    %v1239 = vadd.f32 %v1095, %v1238
    %v1240 = vpop.f32.mrf.mxu0
    %1241 = vdwg.mxu0
    %v1242 = vmax.f32 %v1180, 0.0
    %v1243 = vmax.f32 %v1183, 0.0
    %v1244 = vmax.f32 %v1188, 0.0
    %v1245 = vmax.f32 %v1191, 0.0
    %v1246 = vmax.f32 %v1196, 0.0
    %v1247 = vmax.f32 %v1199, 0.0
    %v1248 = vmax.f32 %v1204, 0.0
    %v1249 = vmax.f32 %v1207, 0.0
    %v1250 = vmax.f32 %v1212, 0.0
    %v1251 = vmax.f32 %v1215, 0.0
    %v1252 = vmax.f32 %v1220, 0.0
    %v1253 = vmax.f32 %v1223, 0.0
    %v1254 = vmax.f32 %v1228, 0.0
    %v1255 = vmax.f32 %v1231, 0.0
    %v1256 = vmax.f32 %v1236, 0.0
    %v1257 = vmax.f32 %v1239, 0.0
    %v1258 = vpack.c.bf16 %v1243, %v1242
    %v1259 = vpack.c.bf16 %v1245, %v1244
    %v1260 = vpack.c.bf16 %v1247, %v1246
    %v1261 = vpack.c.bf16 %v1249, %v1248
    %v1262 = vpack.c.bf16 %v1251, %v1250
    %v1263 = vpack.c.bf16 %v1253, %v1252
    %v1264 = vpack.c.bf16 %v1255, %v1254
    %v1265 = vpack.c.bf16 %v1257, %v1256
    %v1266 = vld [vmem:[%s9] sm:$0xf]
    %v1267 = vld [vmem:[%s9 + $0x4] sm:$0xf]
    %v1268 = vld [vmem:[%s9 + $0x8] sm:$0xf]
    %v1269 = vld [vmem:[%s9 + $0xc] sm:$0xf]
    %v1270 = vld [vmem:[%s10] sm:$0x1]
    %v1272 = vlaneseq
    %v1273 = vshrl.u32 %v1272, 7
    %v1274 = vsub.s32 0, %v1273
    %v1275 = vrot.slane %v1270, %v1274
    %v1281 = vunpack.c.l.b16 %v1266
    %v1282 = vunpack.c.l.b16 %v1267
    %v1283 = vunpack.c.l.b16 %v1268
    %v1284 = vunpack.c.l.b16 %v1269
    %v1285 = vpack.c.b16 %v1282, %v1281
    %v1286 = vpack.c.b16 %v1284, %v1283
    %vm1289 = vcmask 261120
    %v1291 = vsel %vm1289, %v1258, 0
    %v1294 = vsel %vm1289, %v1259, 0
    %v1297 = vsel %vm1289, %v1260, 0
    %v1300 = vsel %vm1289, %v1261, 0
    %v1303 = vsel %vm1289, %v1262, 0
    %v1306 = vsel %vm1289, %v1263, 0
    %v1309 = vsel %vm1289, %v1264, 0
    %v1312 = vsel %vm1289, %v1265, 0
    %1314 = vmatprep.subr.bf16.mxu0 0
    %1315 = vmatpush1.bf16.msra.mxu0 0
    %1316 = vmatprep.subr.bf16.mxu0 0
    %1317 = vmatpush1.bf16.msra.mxu0 0
    %1318 = vmatprep.subr.bf16.mxu0 0
    %1319 = vmatpush1.bf16.msra.mxu0 0
    %1320 = vmatprep.subr.bf16.mxu0 0
    %1321 = vmatpush1.bf16.msra.mxu0 0
    %1322 = vmatprep.subr.bf16.mxu0 0
    %1323 = vmatpush1.bf16.msra.mxu0 0
    %1324 = vmatprep.subr.bf16.mxu0 0
    %1325 = vmatpush1.bf16.msra.mxu0 0
    %1326 = vmatprep.subr.bf16.mxu0 0
    %1327 = vmatpush1.bf16.msra.mxu0 %v1286
    %1328 = vmatprep.subr.bf16.mxu0 0
    %1329 = vmatpush1.bf16.msra.mxu0 %v1285
    %1330 = vmatprep.subr.bf16.mxu0 0
    %1331 = vmatpush2.bf16.msra.mxu0 0
    %1332 = vmatprep.subr.bf16.mxu0 0
    %1333 = vmatpush2.bf16.msra.mxu0 0
    %1334 = vmatprep.subr.bf16.mxu0 0
    %1335 = vmatpush2.bf16.msra.mxu0 0
    %1336 = vmatprep.subr.bf16.mxu0 0
    %1337 = vmatpush2.bf16.msra.mxu0 0
    %1338 = vmatprep.subr.bf16.mxu0 0
    %1339 = vmatpush2.bf16.msra.mxu0 0
    %1340 = vmatprep.subr.bf16.mxu0 0
    %1341 = vmatpush2.bf16.msra.mxu0 0
    %1342 = vmatprep.subr.bf16.mxu0 0
    %1343 = vmatpush2.bf16.msra.mxu0 0
    %1344 = vmatprep.subr.bf16.mxu0 0
    %1345 = vmatpush2.bf16.msra.mxu0 0
    %1346 = vmatprep.mubr.bf16.mxu0 0
    %1347 = vmatmul.mubr.bf16.gmra.mxu0 %v1291
    %v1348 = vpop.f32.mrf.mxu0
    %v1349 = vadd.f32 %v1275, %v1348
    %v1350 = vpop.f32.mrf.mxu0
    %v1351 = vpop.f32.mrf.mxu0
    %v1352 = vadd.f32 %v1275, %v1351
    %v1353 = vpop.f32.mrf.mxu0
    %1354 = vmatprep.mubr.bf16.mxu0 0
    %1355 = vmatmul.mubr.bf16.gmra.mxu0 %v1294
    %v1356 = vpop.f32.mrf.mxu0
    %v1357 = vadd.f32 %v1275, %v1356
    %v1358 = vpop.f32.mrf.mxu0
    %v1359 = vpop.f32.mrf.mxu0
    %v1360 = vadd.f32 %v1275, %v1359
    %v1361 = vpop.f32.mrf.mxu0
    %1362 = vmatprep.mubr.bf16.mxu0 0
    %1363 = vmatmul.mubr.bf16.gmra.mxu0 %v1297
    %v1364 = vpop.f32.mrf.mxu0
    %v1365 = vadd.f32 %v1275, %v1364
    %v1366 = vpop.f32.mrf.mxu0
    %v1367 = vpop.f32.mrf.mxu0
    %v1368 = vadd.f32 %v1275, %v1367
    %v1369 = vpop.f32.mrf.mxu0
    %1370 = vmatprep.mubr.bf16.mxu0 0
    %1371 = vmatmul.mubr.bf16.gmra.mxu0 %v1300
    %v1372 = vpop.f32.mrf.mxu0
    %v1373 = vadd.f32 %v1275, %v1372
    %v1374 = vpop.f32.mrf.mxu0
    %v1375 = vpop.f32.mrf.mxu0
    %v1376 = vadd.f32 %v1275, %v1375
    %v1377 = vpop.f32.mrf.mxu0
    %1378 = vmatprep.mubr.bf16.mxu0 0
    %1379 = vmatmul.mubr.bf16.gmra.mxu0 %v1303
    %v1380 = vpop.f32.mrf.mxu0
    %v1381 = vadd.f32 %v1275, %v1380
    %v1382 = vpop.f32.mrf.mxu0
    %v1383 = vpop.f32.mrf.mxu0
    %v1384 = vadd.f32 %v1275, %v1383
    %v1385 = vpop.f32.mrf.mxu0
    %1386 = vmatprep.mubr.bf16.mxu0 0
    %1387 = vmatmul.mubr.bf16.gmra.mxu0 %v1306
    %v1388 = vpop.f32.mrf.mxu0
    %v1389 = vadd.f32 %v1275, %v1388
    %v1390 = vpop.f32.mrf.mxu0
    %v1391 = vpop.f32.mrf.mxu0
    %v1392 = vadd.f32 %v1275, %v1391
    %v1393 = vpop.f32.mrf.mxu0
    %1394 = vmatprep.mubr.bf16.mxu0 0
    %1395 = vmatmul.mubr.bf16.gmra.mxu0 %v1309
    %v1396 = vpop.f32.mrf.mxu0
    %v1397 = vadd.f32 %v1275, %v1396
    %v1398 = vpop.f32.mrf.mxu0
    %v1399 = vpop.f32.mrf.mxu0
    %v1400 = vadd.f32 %v1275, %v1399
    %v1401 = vpop.f32.mrf.mxu0
    %1402 = vmatprep.mubr.bf16.mxu0 0
    %1403 = vmatmul.mubr.bf16.gmra.mxu0 %v1312
    %v1404 = vpop.f32.mrf.mxu0
    %v1405 = vadd.f32 %v1275, %v1404
    %v1406 = vpop.f32.mrf.mxu0
    %v1407 = vpop.f32.mrf.mxu0
    %v1408 = vadd.f32 %v1275, %v1407
    %v1409 = vpop.f32.mrf.mxu0
    %1410 = vdwg.mxu0
    %1411 = vst [vmem:[#allocation12] sm:$0xff] %v1349
    %1412 = vst [vmem:[#allocation12 + $0x8] sm:$0xff] %v1352
    %1413 = vst [vmem:[#allocation12 + $0x10] sm:$0xff] %v1357
    %1414 = vst [vmem:[#allocation12 + $0x18] sm:$0xff] %v1360
    %1415 = vst [vmem:[#allocation12 + $0x20] sm:$0xff] %v1365
    %1416 = vst [vmem:[#allocation12 + $0x28] sm:$0xff] %v1368
    %1417 = vst [vmem:[#allocation12 + $0x30] sm:$0xff] %v1373
    %1418 = vst [vmem:[#allocation12 + $0x38] sm:$0xff] %v1376
    %1419 = vst [vmem:[#allocation12 + $0x40] sm:$0xff] %v1381
    %1420 = vst [vmem:[#allocation12 + $0x48] sm:$0xff] %v1384
    %1421 = vst [vmem:[#allocation12 + $0x50] sm:$0xff] %v1389
    %1422 = vst [vmem:[#allocation12 + $0x58] sm:$0xff] %v1392
    %1423 = vst [vmem:[#allocation12 + $0x60] sm:$0xff] %v1397
    %1424 = vst [vmem:[#allocation12 + $0x68] sm:$0xff] %v1400
    %1425 = vst [vmem:[#allocation12 + $0x70] sm:$0xff] %v1405
    %1426 = vst [vmem:[#allocation12 + $0x78] sm:$0xff] %v1408
    // Predicated region
    $region65: #{tpu_custom_call.1} parent=1 // pred_check
      _
    $region66: #{tpu_custom_call.1} parent=1 // pred_check_branch
      %1428 = sbr.rel (0) target = $region68
    $region67: #{tpu_custom_call.1} parent=1 // pred_region
      %s1430 = ssub.s32 2048, 2048
      %1431 = vsyncadd [#allocation8], %s1430
      %s1432 = sshll.u32 [#allocation12], 4
      %s1433 = int_to_ptr.vmem [resolvable:$true] %s1432
      %1438 = dma.vmem_to_hbm [thread:$0]  %s1433, 2048, %s11, [#allocation8], 128, 128, 8
    $region68: #{tpu_custom_call.1} parent=1 // pred_fallthru
      _
    // Predicated region
    $region69: #{tpu_custom_call.1} parent=1 // pred_check
      _
    $region70: #{tpu_custom_call.1} parent=1 // pred_check_branch
      %1440 = sbr.rel (0) target = $region72
    $region71: #{tpu_custom_call.1} parent=1 // pred_region
      %1441 = dma.done [#allocation8], 2048
    $region72: #{tpu_custom_call.1} parent=1 // pred_fallthru
      _
    %1442 = vsyncpa [#allocation7], 1
    %1443 = vsyncpa [#allocation10], 1
    %1444 = vsyncpa [#allocation8], 1

</llo_original>
